<compile_context>
chip_gen: v6e
topology: v6e:2x2x1
jax: 0.10.0
libtpu: 0.0.40
codegen_flags: <defaults>
</compile_context>

<pallas_src>
import functools
import math

import jax
import jax.numpy as jnp
from jax.experimental import pallas as pl
from jax.experimental.pallas import tpu as pltpu

_VMEM_LIMIT = 32 * 1024 * 1024  # safe on v5e/v6e/v7x (v7x physical VMEM is 64 MiB)


# ----------------------------------------------------------------------------
# Small helpers
# ----------------------------------------------------------------------------
def _round_up(x, m):
    return ((x + m - 1) // m) * m


def _pick_tile(total, cap, quantum):
    """Largest divisor of `total` that is a multiple of `quantum` and <= cap."""
    best = min(total, quantum)
    d = quantum
    while d <= min(cap, total):
        if total % d == 0:
            best = d
        d += quantum
    return best


def _gelu_tanh(x):
    # tanh-approx GELU (torch.nn.GELU(approximate='tanh')); tanh lands on the EUP.
    # Deviation from the exact-erf GELU used by open_clip is < 1e-3 relative.
    c = math.sqrt(2.0 / math.pi)
    return 0.5 * x * (1.0 + jnp.tanh(c * (x + 0.044715 * x * x * x)))


# ----------------------------------------------------------------------------
# Fused linear kernel: optional LayerNorm prologue, optional bias, optional GELU,
# optional residual-add epilogue.  Tiled over (M, N, K) with f32 accumulation.
# ----------------------------------------------------------------------------
def _linear_kernel(*refs, grid_k, has_ln, has_bias, has_res, activation, eps):
    it = iter(refs)
    x_ref = next(it)
    w_ref = next(it)
    b_ref = next(it) if has_bias else None
    g_ref = next(it) if has_ln else None
    bt_ref = next(it) if has_ln else None
    r_ref = next(it) if has_res else None
    o_ref = next(it)
    acc_ref = next(it) if grid_k > 1 else None

    if has_ln:
        # LayerNorm over the full feature row (K is a single block when has_ln).
        xv = x_ref[...].astype(jnp.float32)
        mu = jnp.mean(xv, axis=-1, keepdims=True)
        xc = xv - mu
        var = jnp.mean(xc * xc, axis=-1, keepdims=True)
        xv = (xc * jax.lax.rsqrt(var + eps)) * g_ref[...] + bt_ref[...]
        xv = xv.astype(jnp.bfloat16)
    else:
        xv = x_ref[...].astype(jnp.bfloat16)

    part = jnp.dot(xv, w_ref[...].astype(jnp.bfloat16),
                   preferred_element_type=jnp.float32)

    def _epilogue(acc):
        y = acc
        if has_bias:
            y = y + b_ref[...].astype(jnp.float32)
        if activation == "gelu":
            y = _gelu_tanh(y)
        if has_res:
            y = y + r_ref[...].astype(jnp.float32)
        o_ref[...] = y.astype(o_ref.dtype)

    if grid_k == 1:
        _epilogue(part)
    else:
        k = pl.program_id(2)

        @pl.when(k == 0)
        def _():
            acc_ref[...] = jnp.zeros_like(acc_ref)

        acc_ref[...] += part

        @pl.when(k == grid_k - 1)
        def _():
            _epilogue(acc_ref[...])


def pallas_linear(x, w, b=None, *, ln=None, residual=None, activation=None,
                  out_dtype=None, eps=1e-5):
    """y = act(LN(x) @ w + b) [+ residual].   x:[M,K], w:[K,N] (pre-transposed), b:[N]."""
    M, K = x.shape
    Kw, N = w.shape
    assert K == Kw
    out_dtype = out_dtype if out_dtype is not None else x.dtype
    has_ln = ln is not None
    has_bias = b is not None
    has_res = residual is not None

    # Tile sizes (double-buffered blocks stay well under v7x's 64 MiB VMEM).
    tm = min(256, _round_up(M, 8))
    tn = min(512, _round_up(N, 128))
    if has_ln or K <= 1024:
        tk = K                       # single K block (required for the fused LayerNorm)
    else:
        tk = min(1024, _round_up(K, 128))
    Mp, Np, Kp = _round_up(M, tm), _round_up(N, tn), _round_up(K, tk)
    grid_m, grid_n, grid_k = Mp // tm, Np // tn, Kp // tk
    assert not (has_ln and grid_k > 1)

    xp = x if (Mp == M and Kp == K) else jnp.pad(x, ((0, Mp - M), (0, Kp - K)))
    wp = w if (Kp == K and Np == N) else jnp.pad(w, ((0, Kp - K), (0, Np - N)))

    inputs = [xp, wp]
    in_specs = [
        pl.BlockSpec((tm, tk), lambda i, j, k: (i, k)),
        pl.BlockSpec((tk, tn), lambda i, j, k: (k, j)),
    ]
    if has_bias:
        bb = b.astype(jnp.float32)
        bp = (bb if Np == N else jnp.pad(bb, (0, Np - N))).reshape(1, Np)
        inputs.append(bp)
        in_specs.append(pl.BlockSpec((1, tn), lambda i, j, k: (0, j)))
    if has_ln:
        g, bt = ln
        inputs += [g.astype(jnp.float32).reshape(1, K),
                   bt.astype(jnp.float32).reshape(1, K)]
        in_specs += [pl.BlockSpec((1, K), lambda i, j, k: (0, 0)),
                     pl.BlockSpec((1, K), lambda i, j, k: (0, 0))]
    if has_res:
        rp = residual if (Mp == M and Np == N) else jnp.pad(
            residual, ((0, Mp - M), (0, Np - N)))
        inputs.append(rp)
        in_specs.append(pl.BlockSpec((tm, tn), lambda i, j, k: (i, j)))

    scratch = [pltpu.VMEM((tm, tn), jnp.float32)] if grid_k > 1 else []

    bytes_accessed = (Mp * Kp * xp.dtype.itemsize + Kp * Np * wp.dtype.itemsize
                      + Mp * Np * jnp.dtype(out_dtype).itemsize
                      + (Mp * Np * 4 if has_res else 0))
    cost = pl.CostEstimate(
        flops=2 * Mp * Np * Kp,
        transcendentals=(Mp * Np if activation == "gelu" else 0),
        bytes_accessed=bytes_accessed)

    out = pl.pallas_call(
        functools.partial(_linear_kernel, grid_k=grid_k, has_ln=has_ln,
                          has_bias=has_bias, has_res=has_res,
                          activation=activation, eps=eps),
        out_shape=jax.ShapeDtypeStruct((Mp, Np), out_dtype),
        grid=(grid_m, grid_n, grid_k),
        in_specs=in_specs,
        out_specs=pl.BlockSpec((tm, tn), lambda i, j, k: (i, j)),
        scratch_shapes=scratch,
        compiler_params=pltpu.CompilerParams(
            dimension_semantics=("parallel", "parallel", "arbitrary"),
            vmem_limit_bytes=_VMEM_LIMIT),
        cost_estimate=cost,
    )(*inputs)
    if Mp != M or Np != N:
        out = out[:M, :N]
    return out


# ----------------------------------------------------------------------------
# Standalone row-tiled LayerNorm (used where not fused: ln_pre, ln_post w/o proj)
# ----------------------------------------------------------------------------
def _layernorm_kernel(x_ref, g_ref, b_ref, o_ref, *, eps):
    x = x_ref[...].astype(jnp.float32)
    mu = jnp.mean(x, axis=-1, keepdims=True)
    xc = x - mu
    var = jnp.mean(xc * xc, axis=-1, keepdims=True)
    o_ref[...] = (xc * jax.lax.rsqrt(var + eps) * g_ref[...] + b_ref[...]).astype(o_ref.dtype)


def pallas_layernorm(x, gamma, beta, eps=1e-5):
    M, D = x.shape
    tm = min(512, _round_up(M, 8))
    Mp = _round_up(M, tm)
    xp = x if Mp == M else jnp.pad(x, ((0, Mp - M), (0, 0)))
    out = pl.pallas_call(
        functools.partial(_layernorm_kernel, eps=eps),
        out_shape=jax.ShapeDtypeStruct((Mp, D), x.dtype),
        grid=(Mp // tm,),
        in_specs=[pl.BlockSpec((tm, D), lambda i: (i, 0)),
                  pl.BlockSpec((1, D), lambda i: (0, 0)),
                  pl.BlockSpec((1, D), lambda i: (0, 0))],
        out_specs=pl.BlockSpec((tm, D), lambda i: (i, 0)),
        compiler_params=pltpu.CompilerParams(
            dimension_semantics=("parallel",), vmem_limit_bytes=_VMEM_LIMIT),
    )(xp, gamma.astype(jnp.float32).reshape(1, D), beta.astype(jnp.float32).reshape(1, D))
    return out[:M] if Mp != M else out


# ----------------------------------------------------------------------------
# Multi-head attention: grid=(B, q_blocks); all heads sliced from the fused QKV
# inside the kernel, output written as one lane-dense (tq, width) slab.
# ----------------------------------------------------------------------------
def _attention_kernel(qrow_ref, kv_ref, o_ref, *, heads, head_dim, width, scale, s_valid):
    S_pad = kv_ref.shape[1]
    tq = qrow_ref.shape[1]
    # key mask computed once and shared by every head
    key_mask = jax.lax.broadcasted_iota(jnp.int32, (tq, S_pad), 1) < s_valid
    outs = []
    for h in range(heads):                      # static unroll over heads
        # scale folded into q: (tq, Dh) multiply instead of a (tq, S) multiply.
        q = (qrow_ref[0, :, h * head_dim:(h + 1) * head_dim].astype(jnp.float32)
             * scale).astype(jnp.bfloat16)                                      # (tq, Dh)
        k = kv_ref[0, :, width + h * head_dim:width + (h + 1) * head_dim]       # (S, Dh)
        v = kv_ref[0, :, 2 * width + h * head_dim:2 * width + (h + 1) * head_dim]
        s = jax.lax.dot_general(q, k, (((1,), (1,)), ((), ())),
                                preferred_element_type=jnp.float32)             # (tq, S)
        s = jnp.where(key_mask, s, -1e30)       # mask padded key rows
        m = jnp.max(s, axis=-1, keepdims=True)
        p = jnp.exp(s - m)
        denom = jnp.sum(p, axis=-1, keepdims=True)
        o = jnp.dot(p.astype(jnp.bfloat16), v, preferred_element_type=jnp.float32)
        o = o * pl.reciprocal(denom, approx=True)
        outs.append(o)
    o_ref[0] = jnp.concatenate(outs, axis=-1).astype(o_ref.dtype)


def pallas_attention(qkv, heads, head_dim, s_valid):
    """qkv: [B, S_pad, 3*width] bf16 (fused in_proj output) -> [B, S_pad, width] bf16."""
    B, S_pad, W3 = qkv.shape
    width = W3 // 3
    tq = _pick_tile(S_pad, 128, 8)
    scale = 1.0 / math.sqrt(head_dim)
    cost = pl.CostEstimate(
        flops=4 * B * heads * S_pad * S_pad * head_dim,
        transcendentals=B * heads * S_pad * S_pad,
        bytes_accessed=2 * qkv.size * qkv.dtype.itemsize + B * S_pad * width * 2)
    return pl.pallas_call(
        functools.partial(_attention_kernel, heads=heads, head_dim=head_dim,
                          width=width, scale=scale, s_valid=s_valid),
        out_shape=jax.ShapeDtypeStruct((B, S_pad, width), jnp.bfloat16),
        grid=(B, S_pad // tq),
        in_specs=[
            pl.BlockSpec((1, tq, W3), lambda b, qi: (b, qi, 0)),     # query rows
            pl.BlockSpec((1, S_pad, W3), lambda b, qi: (b, 0, 0)),   # full K/V (resident per b)
        ],
        out_specs=pl.BlockSpec((1, tq, width), lambda b, qi: (b, qi, 0)),
        compiler_params=pltpu.CompilerParams(
            dimension_semantics=("parallel", "parallel"),
            vmem_limit_bytes=_VMEM_LIMIT),
        cost_estimate=cost,
    )(qkv, qkv)


# ----------------------------------------------------------------------------
# Parameters (deterministic synthetic init; shapes follow open_clip VisionTransformer;
# matmul weights stored pre-transposed as [K, N] and in bf16).
# ----------------------------------------------------------------------------
def init_params(key, cfg):
    width = cfg["width"]
    p = cfg["patch_size"]
    C = cfg["in_channels"]
    n = (cfg["img_size"] // p) ** 2
    S = n + 1
    mlp = cfg["mlp_ratio"] * width
    keys = iter(jax.random.split(key, 8 + 8 * cfg["layers"]))

    def nrm(shape, std, dtype=jnp.bfloat16):
        return (std * jax.random.normal(next(keys), shape, dtype=jnp.float32)).astype(dtype)

    params = {
        # conv1 weight pre-flattened as [C*p*p, width] (== torch conv1.weight.reshape(width,-1).T)
        "patch_w": nrm((C * p * p, width), 0.02),
        "class_embedding": nrm((width,), 0.02, jnp.float32),
        "positional_embedding": nrm((S, width), 0.01, jnp.float32),
        "ln_pre_g": jnp.ones((width,), jnp.float32),
        "ln_pre_b": jnp.zeros((width,), jnp.float32),
        "ln_post_g": jnp.ones((width,), jnp.float32),
        "ln_post_b": jnp.zeros((width,), jnp.float32),
        "proj": nrm((width, cfg["output_dim"]), width ** -0.5) if cfg["with_proj_layer"] else None,
        "blocks": [],
    }
    for _ in range(cfg["layers"]):
        params["blocks"].append({
            "ln1_g": jnp.ones((width,), jnp.float32),
            "ln1_b": jnp.zeros((width,), jnp.float32),
            "in_proj_w": nrm((width, 3 * width), 0.02),     # [K, N] = in_proj_weight.T
            "in_proj_b": jnp.zeros((3 * width,), jnp.float32),
            "out_proj_w": nrm((width, width), 0.02),
            "out_proj_b": jnp.zeros((width,), jnp.float32),
            "ln2_g": jnp.ones((width,), jnp.float32),
            "ln2_b": jnp.zeros((width,), jnp.float32),
            "fc1_w": nrm((width, mlp), 0.02),
            "fc1_b": jnp.zeros((mlp,), jnp.float32),
            "fc2_w": nrm((mlp, width), 0.02),
            "fc2_b": jnp.zeros((width,), jnp.float32),
        })
    return params


# ----------------------------------------------------------------------------
# Forward (glue reshapes in JAX; all heavy compute in fused Pallas kernels)
# ----------------------------------------------------------------------------
def openclip_vit_forward(x, params, cfg):
    B, C, H, W = x.shape
    p = cfg["patch_size"]
    width = cfg["width"]
    heads = cfg["heads"]
    gh, gw = H // p, W // p
    n = gh * gw
    S = n + 1
    head_dim = width // heads

    # conv1 (kernel=stride=patch, no bias) == matmul over flattened patches
    patches = x.reshape(B, C, gh, p, gw, p).transpose(0, 2, 4, 1, 3, 5).reshape(B * n, C * p * p)
    tok = pallas_linear(patches, params["patch_w"], out_dtype=jnp.float32).reshape(B, n, width)

    # class token + positional embedding
    cls = jnp.broadcast_to(params["class_embedding"].reshape(1, 1, width), (B, 1, width))
    xt = jnp.concatenate([cls, tok], axis=1) + params["positional_embedding"][None]

    # pad sequence once to a multiple of 8 (padded keys are masked inside attention)
    S_pad = _round_up(S, 8)
    if S_pad != S:
        xt = jnp.pad(xt, ((0, 0), (0, S_pad - S), (0, 0)))

    # ln_pre
    x2 = pallas_layernorm(xt.reshape(B * S_pad, width),
                          params["ln_pre_g"], params["ln_pre_b"])        # [B*S_pad, width] f32

    # transformer blocks (ln fused into QKV/fc1, residual fused into out_proj/fc2)
    for blk in params["blocks"]:
        qkv = pallas_linear(x2, blk["in_proj_w"], blk["in_proj_b"],
                            ln=(blk["ln1_g"], blk["ln1_b"]),
                            out_dtype=jnp.bfloat16)                       # [B*S_pad, 3*width]
        a = pallas_attention(qkv.reshape(B, S_pad, 3 * width), heads, head_dim, S)
        x2 = pallas_linear(a.reshape(B * S_pad, width), blk["out_proj_w"], blk["out_proj_b"],
                           residual=x2, out_dtype=jnp.float32)
        h1 = pallas_linear(x2, blk["fc1_w"], blk["fc1_b"],
                           ln=(blk["ln2_g"], blk["ln2_b"]),
                           activation="gelu", out_dtype=jnp.bfloat16)
        x2 = pallas_linear(h1, blk["fc2_w"], blk["fc2_b"],
                           residual=x2, out_dtype=jnp.float32)

    # cls-token pooling + ln_post (+ projection), fused into a single kernel when proj exists
    pooled = x2.reshape(B, S_pad, width)[:, 0]                            # [B, width]
    if params["proj"] is not None:
        pooled = pallas_linear(pooled, params["proj"], None,
                               ln=(params["ln_post_g"], params["ln_post_b"]),
                               out_dtype=jnp.float32)
    else:
        pooled = pallas_layernorm(pooled, params["ln_post_g"], params["ln_post_b"])
    return pooled


# ----------------------------------------------------------------------------
if __name__ == "__main__":
    cfg = dict(
        img_size=16, patch_size=8, in_channels=3,
        width=32, heads=2, layers=2, mlp_ratio=4,
        output_dim=16, with_proj_layer=True,
    )
    # Stored on the PyTorch module but unused in forward (preprocessing transform stats):
    _mean = (0.48145466, 0.4578275, 0.40821073)
    _std = (0.26862954, 0.26130258, 0.27577711)

    key = jax.random.PRNGKey(0)
    kx, kp = jax.random.split(key)
    x = jax.random.normal(kx, (2, cfg["in_channels"], cfg["img_size"], cfg["img_size"]),
                          dtype=jnp.float32)
    params = init_params(kp, cfg)

    fwd = jax.jit(lambda xx, pp: openclip_vit_forward(xx, pp, cfg))
    out = jax.block_until_ready(fwd(x, params))

    expected_out_dim = cfg["output_dim"] if cfg["with_proj_layer"] else cfg["width"]
    assert out.shape == (2, expected_out_dim), out.shape
    assert jnp.all(jnp.isfinite(out))
    print("KERNEL_OK")
</pallas_src>

<mosaic_0001>
module attributes {stable_mosaic.version = 11 : i64} {
  func.func @_linear_kernel(%arg0: i32, %arg1: i32, %arg2: i32, %arg3: memref<8x192xf32, #tpu.memory_space<vmem>>, %arg4: memref<192x128xbf16, #tpu.memory_space<vmem>>, %arg5: memref<8x128xf32, #tpu.memory_space<vmem>>) attributes {dimension_semantics = [#tpu.dimension_semantics<parallel>, #tpu.dimension_semantics<parallel>, #tpu.dimension_semantics<arbitrary>], iteration_bounds = array<i64: 1, 1, 1>, scalar_prefetch = 0 : i64, scratch_operands = 0 : i64, tpu.core_type = #tpu.core_type<tc>, window_params = [{transform_indices = @transform_0, window_bounds = array<i64: 8, 192>}, {transform_indices = @transform_1, window_bounds = array<i64: 192, 128>}, {transform_indices = @transform_2, window_bounds = array<i64: 8, 128>}]} {
    %c0 = arith.constant 0 : index
    %c0_0 = arith.constant 0 : index
    %0 = vector.load %arg3[%c0, %c0_0] : memref<8x192xf32, #tpu.memory_space<vmem>>, vector<8x192xf32>
    %1 = arith.truncf %0 : vector<8x192xf32> to vector<8x192xbf16>
    %c0_1 = arith.constant 0 : index
    %c0_2 = arith.constant 0 : index
    %2 = vector.load %arg4[%c0_1, %c0_2] : memref<192x128xbf16, #tpu.memory_space<vmem>>, vector<192x128xbf16>
    %cst = arith.constant dense<0.000000e+00> : vector<8x128xf32>
    %3 = tpu.matmul %1, %2, %cst {dimension_numbers = #tpu.dot_dimension_numbers<[1], [0], [0], [1], [0, 0, 1, 1], [], []>} : vector<8x192xbf16>, vector<192x128xbf16>, vector<8x128xf32> -> vector<8x128xf32>
    %c0_3 = arith.constant 0 : index
    %c0_4 = arith.constant 0 : index
    %4 = vector.load %arg5[%c0_3, %c0_4] : memref<8x128xf32, #tpu.memory_space<vmem>>, vector<8x128xf32>
    tpu.vector_store %arg5[%c0_3, %c0_4], %3 {strides = array<i32>} : memref<8x128xf32, #tpu.memory_space<vmem>>, vector<8x128xf32>,
    return
  }
  func.func @transform_0(%arg0: i32, %arg1: i32, %arg2: i32) -> (i32, i32) {
    %c0_i32 = arith.constant 0 : i32
    return %arg0, %arg2 : i32, i32
  }
  func.func @transform_1(%arg0: i32, %arg1: i32, %arg2: i32) -> (i32, i32) {
    %c0_i32 = arith.constant 0 : i32
    return %arg2, %arg1 : i32, i32
  }
  func.func @transform_2(%arg0: i32, %arg1: i32, %arg2: i32) -> (i32, i32) {
    %c0_i32 = arith.constant 0 : i32
    return %arg0, %arg1 : i32, i32
  }
}

module attributes {stable_mosaic.version = 11 : i64} {
  func.func @_layernorm_kernel(%arg0: i32, %arg1: memref<16x32xf32, #tpu.memory_space<vmem>>, %arg2: memref<1x32xf32, #tpu.memory_space<vmem>>, %arg3: memref<1x32xf32, #tpu.memory_space<vmem>>, %arg4: memref<16x32xf32, #tpu.memory_space<vmem>>) attributes {dimension_semantics = [#tpu.dimension_semantics<parallel>], iteration_bounds = array<i64: 1>, scalar_prefetch = 0 : i64, scratch_operands = 0 : i64, tpu.core_type = #tpu.core_type<tc>, window_params = [{transform_indices = @transform_0, window_bounds = array<i64: 16, 32>}, {pipeline_mode = #tpu.pipeline_mode<synchronous>, transform_indices = @transform_1, window_bounds = array<i64: 1, 32>}, {pipeline_mode = #tpu.pipeline_mode<synchronous>, transform_indices = @transform_2, window_bounds = array<i64: 1, 32>}, {transform_indices = @transform_3, window_bounds = array<i64: 16, 32>}]} {
    %c0 = arith.constant 0 : index
    %c0_0 = arith.constant 0 : index
    %0 = vector.load %arg1[%c0, %c0_0] : memref<16x32xf32, #tpu.memory_space<vmem>>, vector<16x32xf32>
    %cst = arith.constant dense<0.000000e+00> : vector<16xf32>
    %1 = vector.multi_reduction <add>, %0, %cst [1] : vector<16x32xf32> to vector<16xf32>
    %2 = vector.shape_cast %1 : vector<16xf32> to vector<16x1xf32>
    %cst_1 = arith.constant 3.200000e+01 : f32
    %3 = vector.broadcast %cst_1 : f32 to vector<16x1xf32>
    %4 = arith.divf %2, %3 : vector<16x1xf32>
    %5 = vector.broadcast %4 : vector<16x1xf32> to vector<16x32xf32>
    %6 = arith.subf %0, %5 : vector<16x32xf32>
    %7 = arith.mulf %6, %6 : vector<16x32xf32>
    %cst_2 = arith.constant dense<0.000000e+00> : vector<16xf32>
    %8 = vector.multi_reduction <add>, %7, %cst_2 [1] : vector<16x32xf32> to vector<16xf32>
    %9 = vector.shape_cast %8 : vector<16xf32> to vector<16x1xf32>
    %cst_3 = arith.constant 3.200000e+01 : f32
    %10 = vector.broadcast %cst_3 : f32 to vector<16x1xf32>
    %11 = arith.divf %9, %10 : vector<16x1xf32>
    %cst_4 = arith.constant 9.99999974E-6 : f32
    %12 = vector.broadcast %cst_4 : f32 to vector<16x1xf32>
    %13 = arith.addf %11, %12 : vector<16x1xf32>
    %14 = math.rsqrt %13 : vector<16x1xf32>
    %15 = vector.broadcast %14 : vector<16x1xf32> to vector<16x32xf32>
    %16 = arith.mulf %6, %15 : vector<16x32xf32>
    %c0_5 = arith.constant 0 : index
    %c0_6 = arith.constant 0 : index
    %17 = vector.load %arg2[%c0_5, %c0_6] : memref<1x32xf32, #tpu.memory_space<vmem>>, vector<1x32xf32>
    %18 = vector.broadcast %17 : vector<1x32xf32> to vector<16x32xf32>
    %19 = arith.mulf %16, %18 : vector<16x32xf32>
    %c0_7 = arith.constant 0 : index
    %c0_8 = arith.constant 0 : index
    %20 = vector.load %arg3[%c0_7, %c0_8] : memref<1x32xf32, #tpu.memory_space<vmem>>, vector<1x32xf32>
    %21 = vector.broadcast %20 : vector<1x32xf32> to vector<16x32xf32>
    %22 = arith.addf %19, %21 : vector<16x32xf32>
    %c0_9 = arith.constant 0 : index
    %c0_10 = arith.constant 0 : index
    %23 = vector.load %arg4[%c0_9, %c0_10] : memref<16x32xf32, #tpu.memory_space<vmem>>, vector<16x32xf32>
    tpu.vector_store %arg4[%c0_9, %c0_10], %22 {strides = array<i32>} : memref<16x32xf32, #tpu.memory_space<vmem>>, vector<16x32xf32>,
    return
  }
  func.func @transform_0(%arg0: i32) -> (i32, i32) {
    %c0_i32 = arith.constant 0 : i32
    %c0_i32_0 = arith.constant 0 : i32
    return %arg0, %c0_i32 : i32, i32
  }
  func.func @transform_1(%arg0: i32) -> (i32, i32) {
    %c0_i32 = arith.constant 0 : i32
    %c0_i32_0 = arith.constant 0 : i32
    %c0_i32_1 = arith.constant 0 : i32
    return %c0_i32, %c0_i32_0 : i32, i32
  }
  func.func @transform_2(%arg0: i32) -> (i32, i32) {
    %c0_i32 = arith.constant 0 : i32
    %c0_i32_0 = arith.constant 0 : i32
    %c0_i32_1 = arith.constant 0 : i32
    return %c0_i32, %c0_i32_0 : i32, i32
  }
  func.func @transform_3(%arg0: i32) -> (i32, i32) {
    %c0_i32 = arith.constant 0 : i32
    %c0_i32_0 = arith.constant 0 : i32
    return %arg0, %c0_i32 : i32, i32
  }
}

module attributes {stable_mosaic.version = 11 : i64} {
  func.func @_linear_kernel(%arg0: i32, %arg1: i32, %arg2: i32, %arg3: memref<16x32xf32, #tpu.memory_space<vmem>>, %arg4: memref<32x128xbf16, #tpu.memory_space<vmem>>, %arg5: memref<1x128xf32, #tpu.memory_space<vmem>>, %arg6: memref<1x32xf32, #tpu.memory_space<vmem>>, %arg7: memref<1x32xf32, #tpu.memory_space<vmem>>, %arg8: memref<16x128xbf16, #tpu.memory_space<vmem>>) attributes {dimension_semantics = [#tpu.dimension_semantics<parallel>, #tpu.dimension_semantics<parallel>, #tpu.dimension_semantics<arbitrary>], iteration_bounds = array<i64: 1, 1, 1>, scalar_prefetch = 0 : i64, scratch_operands = 0 : i64, tpu.core_type = #tpu.core_type<tc>, window_params = [{transform_indices = @transform_0, window_bounds = array<i64: 16, 32>}, {transform_indices = @transform_1, window_bounds = array<i64: 32, 128>}, {transform_indices = @transform_2, window_bounds = array<i64: 1, 128>}, {pipeline_mode = #tpu.pipeline_mode<synchronous>, transform_indices = @transform_3, window_bounds = array<i64: 1, 32>}, {pipeline_mode = #tpu.pipeline_mode<synchronous>, transform_indices = @transform_4, window_bounds = array<i64: 1, 32>}, {transform_indices = @transform_5, window_bounds = array<i64: 16, 128>}]} {
    %c0 = arith.constant 0 : index
    %c0_0 = arith.constant 0 : index
    %0 = vector.load %arg3[%c0, %c0_0] : memref<16x32xf32, #tpu.memory_space<vmem>>, vector<16x32xf32>
    %cst = arith.constant dense<0.000000e+00> : vector<16xf32>
    %1 = vector.multi_reduction <add>, %0, %cst [1] : vector<16x32xf32> to vector<16xf32>
    %2 = vector.shape_cast %1 : vector<16xf32> to vector<16x1xf32>
    %cst_1 = arith.constant 3.200000e+01 : f32
    %3 = vector.broadcast %cst_1 : f32 to vector<16x1xf32>
    %4 = arith.divf %2, %3 : vector<16x1xf32>
    %5 = vector.broadcast %4 : vector<16x1xf32> to vector<16x32xf32>
    %6 = arith.subf %0, %5 : vector<16x32xf32>
    %7 = arith.mulf %6, %6 : vector<16x32xf32>
    %cst_2 = arith.constant dense<0.000000e+00> : vector<16xf32>
    %8 = vector.multi_reduction <add>, %7, %cst_2 [1] : vector<16x32xf32> to vector<16xf32>
    %9 = vector.shape_cast %8 : vector<16xf32> to vector<16x1xf32>
    %cst_3 = arith.constant 3.200000e+01 : f32
    %10 = vector.broadcast %cst_3 : f32 to vector<16x1xf32>
    %11 = arith.divf %9, %10 : vector<16x1xf32>
    %cst_4 = arith.constant 9.99999974E-6 : f32
    %12 = vector.broadcast %cst_4 : f32 to vector<16x1xf32>
    %13 = arith.addf %11, %12 : vector<16x1xf32>
    %14 = math.rsqrt %13 : vector<16x1xf32>
    %15 = vector.broadcast %14 : vector<16x1xf32> to vector<16x32xf32>
    %16 = arith.mulf %6, %15 : vector<16x32xf32>
    %c0_5 = arith.constant 0 : index
    %c0_6 = arith.constant 0 : index
    %17 = vector.load %arg6[%c0_5, %c0_6] : memref<1x32xf32, #tpu.memory_space<vmem>>, vector<1x32xf32>
    %18 = vector.broadcast %17 : vector<1x32xf32> to vector<16x32xf32>
    %19 = arith.mulf %16, %18 : vector<16x32xf32>
    %c0_7 = arith.constant 0 : index
    %c0_8 = arith.constant 0 : index
    %20 = vector.load %arg7[%c0_7, %c0_8] : memref<1x32xf32, #tpu.memory_space<vmem>>, vector<1x32xf32>
    %21 = vector.broadcast %20 : vector<1x32xf32> to vector<16x32xf32>
    %22 = arith.addf %19, %21 : vector<16x32xf32>
    %23 = arith.truncf %22 : vector<16x32xf32> to vector<16x32xbf16>
    %c0_9 = arith.constant 0 : index
    %c0_10 = arith.constant 0 : index
    %24 = vector.load %arg4[%c0_9, %c0_10] : memref<32x128xbf16, #tpu.memory_space<vmem>>, vector<32x128xbf16>
    %cst_11 = arith.constant dense<0.000000e+00> : vector<16x128xf32>
    %25 = tpu.matmul %23, %24, %cst_11 {dimension_numbers = #tpu.dot_dimension_numbers<[1], [0], [0], [1], [0, 0, 1, 1], [], []>} : vector<16x32xbf16>, vector<32x128xbf16>, vector<16x128xf32> -> vector<16x128xf32>
    %c0_12 = arith.constant 0 : index
    %c0_13 = arith.constant 0 : index
    %26 = vector.load %arg5[%c0_12, %c0_13] : memref<1x128xf32, #tpu.memory_space<vmem>>, vector<1x128xf32>
    %27 = vector.broadcast %26 : vector<1x128xf32> to vector<16x128xf32>
    %28 = arith.addf %25, %27 : vector<16x128xf32>
    %29 = arith.truncf %28 : vector<16x128xf32> to vector<16x128xbf16>
    %c0_14 = arith.constant 0 : index
    %c0_15 = arith.constant 0 : index
    %30 = vector.load %arg8[%c0_14, %c0_15] : memref<16x128xbf16, #tpu.memory_space<vmem>>, vector<16x128xbf16>
    tpu.vector_store %arg8[%c0_14, %c0_15], %29 {strides = array<i32>} : memref<16x128xbf16, #tpu.memory_space<vmem>>, vector<16x128xbf16>,
    return
  }
  func.func @transform_0(%arg0: i32, %arg1: i32, %arg2: i32) -> (i32, i32) {
    %c0_i32 = arith.constant 0 : i32
    return %arg0, %arg2 : i32, i32
  }
  func.func @transform_1(%arg0: i32, %arg1: i32, %arg2: i32) -> (i32, i32) {
    %c0_i32 = arith.constant 0 : i32
    return %arg2, %arg1 : i32, i32
  }
  func.func @transform_2(%arg0: i32, %arg1: i32, %arg2: i32) -> (i32, i32) {
    %c0_i32 = arith.constant 0 : i32
    %c0_i32_0 = arith.constant 0 : i32
    return %c0_i32, %arg1 : i32, i32
  }
  func.func @transform_3(%arg0: i32, %arg1: i32, %arg2: i32) -> (i32, i32) {
    %c0_i32 = arith.constant 0 : i32
    %c0_i32_0 = arith.constant 0 : i32
    %c0_i32_1 = arith.constant 0 : i32
    return %c0_i32, %c0_i32_0 : i32, i32
  }
  func.func @transform_4(%arg0: i32, %arg1: i32, %arg2: i32) -> (i32, i32) {
    %c0_i32 = arith.constant 0 : i32
    %c0_i32_0 = arith.constant 0 : i32
    %c0_i32_1 = arith.constant 0 : i32
    return %c0_i32, %c0_i32_0 : i32, i32
  }
  func.func @transform_5(%arg0: i32, %arg1: i32, %arg2: i32) -> (i32, i32) {
    %c0_i32 = arith.constant 0 : i32
    return %arg0, %arg1 : i32, i32
  }
}

module attributes {stable_mosaic.version = 11 : i64} {
  func.func @_attention_kernel(%arg0: i32, %arg1: i32, %arg2: memref<1x8x96xbf16, #tpu.memory_space<vmem>>, %arg3: memref<1x8x96xbf16, #tpu.memory_space<vmem>>, %arg4: memref<1x8x32xbf16, #tpu.memory_space<vmem>>) attributes {dimension_semantics = [#tpu.dimension_semantics<parallel>, #tpu.dimension_semantics<parallel>], iteration_bounds = array<i64: 2, 1>, scalar_prefetch = 0 : i64, scratch_operands = 0 : i64, tpu.core_type = #tpu.core_type<tc>, window_params = [{transform_indices = @transform_0, window_bounds = array<i64: 1, 8, 96>}, {transform_indices = @transform_1, window_bounds = array<i64: 1, 8, 96>}, {transform_indices = @transform_2, window_bounds = array<i64: 1, 8, 32>}]} {
    %0 = tpu.iota {dimensions = array<i32: 1>} : vector<8x8xi32>
    %c5_i32 = arith.constant 5 : i32
    %1 = vector.broadcast %c5_i32 : i32 to vector<8x8xi32>
    %2 = arith.cmpi slt, %0, %1 : vector<8x8xi32>
    %c0 = arith.constant 0 : index
    %c0_0 = arith.constant 0 : index
    %c0_1 = arith.constant 0 : index
    %3 = vector.load %arg2[%c0, %c0_0, %c0_1] : memref<1x8x96xbf16, #tpu.memory_space<vmem>>, vector<1x8x16xbf16>
    %4 = vector.shape_cast %3 : vector<1x8x16xbf16> to vector<8x16xbf16>
    %5 = arith.extf %4 : vector<8x16xbf16> to vector<8x16xf32>
    %cst = arith.constant 2.500000e-01 : f32
    %6 = vector.broadcast %cst : f32 to vector<8x16xf32>
    %7 = arith.mulf %5, %6 : vector<8x16xf32>
    %8 = arith.truncf %7 : vector<8x16xf32> to vector<8x16xbf16>
    %c0_2 = arith.constant 0 : index
    %c0_3 = arith.constant 0 : index
    %c32 = arith.constant 32 : index
    %9 = vector.load %arg3[%c0_2, %c0_3, %c32] : memref<1x8x96xbf16, #tpu.memory_space<vmem>>, vector<1x8x16xbf16>
    %10 = vector.shape_cast %9 : vector<1x8x16xbf16> to vector<8x16xbf16>
    %c0_4 = arith.constant 0 : index
    %c0_5 = arith.constant 0 : index
    %c64 = arith.constant 64 : index
    %11 = vector.load %arg3[%c0_4, %c0_5, %c64] : memref<1x8x96xbf16, #tpu.memory_space<vmem>>, vector<1x8x16xbf16>
    %12 = vector.shape_cast %11 : vector<1x8x16xbf16> to vector<8x16xbf16>
    %cst_6 = arith.constant dense<0.000000e+00> : vector<8x8xf32>
    %13 = tpu.matmul %8, %10, %cst_6 {dimension_numbers = #tpu.dot_dimension_numbers<[1], [1], [0], [0], [0, 0, 1, 0], [], []>} : vector<8x16xbf16>, vector<8x16xbf16>, vector<8x8xf32> -> vector<8x8xf32>
    %cst_7 = arith.constant -1.000000e+30 : f32
    %14 = vector.broadcast %cst_7 : f32 to vector<8x8xf32>
    %15 = arith.select %2, %13, %14 : vector<8x8xi1>, vector<8x8xf32>
    %cst_8 = arith.constant dense<0xFF800000> : vector<8xf32>
    %16 = vector.multi_reduction <maximumf>, %15, %cst_8 [1] : vector<8x8xf32> to vector<8xf32>
    %17 = vector.shape_cast %16 : vector<8xf32> to vector<8x1xf32>
    %18 = vector.broadcast %17 : vector<8x1xf32> to vector<8x8xf32>
    %19 = arith.subf %15, %18 : vector<8x8xf32>
    %20 = math.exp %19 : vector<8x8xf32>
    %cst_9 = arith.constant dense<0.000000e+00> : vector<8xf32>
    %21 = vector.multi_reduction <add>, %20, %cst_9 [1] : vector<8x8xf32> to vector<8xf32>
    %22 = vector.shape_cast %21 : vector<8xf32> to vector<8x1xf32>
    %23 = arith.truncf %20 : vector<8x8xf32> to vector<8x8xbf16>
    %cst_10 = arith.constant dense<0.000000e+00> : vector<8x16xf32>
    %24 = tpu.matmul %23, %12, %cst_10 {dimension_numbers = #tpu.dot_dimension_numbers<[1], [0], [0], [1], [0, 0, 1, 1], [], []>} : vector<8x8xbf16>, vector<8x16xbf16>, vector<8x16xf32> -> vector<8x16xf32>
    %25 = tpu.reciprocal %22 {approx = true} : vector<8x1xf32> -> vector<8x1xf32>
    %26 = vector.broadcast %25 : vector<8x1xf32> to vector<8x16xf32>
    %27 = arith.mulf %24, %26 : vector<8x16xf32>
    %c0_11 = arith.constant 0 : index
    %c0_12 = arith.constant 0 : index
    %c16 = arith.constant 16 : index
    %28 = vector.load %arg2[%c0_11, %c0_12, %c16] : memref<1x8x96xbf16, #tpu.memory_space<vmem>>, vector<1x8x16xbf16>
    %29 = vector.shape_cast %28 : vector<1x8x16xbf16> to vector<8x16xbf16>
    %30 = arith.extf %29 : vector<8x16xbf16> to vector<8x16xf32>
    %cst_13 = arith.constant 2.500000e-01 : f32
    %31 = vector.broadcast %cst_13 : f32 to vector<8x16xf32>
    %32 = arith.mulf %30, %31 : vector<8x16xf32>
    %33 = arith.truncf %32 : vector<8x16xf32> to vector<8x16xbf16>
    %c0_14 = arith.constant 0 : index
    %c0_15 = arith.constant 0 : index
    %c48 = arith.constant 48 : index
    %34 = vector.load %arg3[%c0_14, %c0_15, %c48] : memref<1x8x96xbf16, #tpu.memory_space<vmem>>, vector<1x8x16xbf16>
    %35 = vector.shape_cast %34 : vector<1x8x16xbf16> to vector<8x16xbf16>
    %c0_16 = arith.constant 0 : index
    %c0_17 = arith.constant 0 : index
    %c80 = arith.constant 80 : index
    %36 = vector.load %arg3[%c0_16, %c0_17, %c80] : memref<1x8x96xbf16, #tpu.memory_space<vmem>>, vector<1x8x16xbf16>
    %37 = vector.shape_cast %36 : vector<1x8x16xbf16> to vector<8x16xbf16>
    %cst_18 = arith.constant dense<0.000000e+00> : vector<8x8xf32>
    %38 = tpu.matmul %33, %35, %cst_18 {dimension_numbers = #tpu.dot_dimension_numbers<[1], [1], [0], [0], [0, 0, 1, 0], [], []>} : vector<8x16xbf16>, vector<8x16xbf16>, vector<8x8xf32> -> vector<8x8xf32>
    %cst_19 = arith.constant -1.000000e+30 : f32
    %39 = vector.broadcast %cst_19 : f32 to vector<8x8xf32>
    %40 = arith.select %2, %38, %39 : vector<8x8xi1>, vector<8x8xf32>
    %cst_20 = arith.constant dense<0xFF800000> : vector<8xf32>
    %41 = vector.multi_reduction <maximumf>, %40, %cst_20 [1] : vector<8x8xf32> to vector<8xf32>
    %42 = vector.shape_cast %41 : vector<8xf32> to vector<8x1xf32>
    %43 = vector.broadcast %42 : vector<8x1xf32> to vector<8x8xf32>
    %44 = arith.subf %40, %43 : vector<8x8xf32>
    %45 = math.exp %44 : vector<8x8xf32>
    %cst_21 = arith.constant dense<0.000000e+00> : vector<8xf32>
    %46 = vector.multi_reduction <add>, %45, %cst_21 [1] : vector<8x8xf32> to vector<8xf32>
    %47 = vector.shape_cast %46 : vector<8xf32> to vector<8x1xf32>
    %48 = arith.truncf %45 : vector<8x8xf32> to vector<8x8xbf16>
    %cst_22 = arith.constant dense<0.000000e+00> : vector<8x16xf32>
    %49 = tpu.matmul %48, %37, %cst_22 {dimension_numbers = #tpu.dot_dimension_numbers<[1], [0], [0], [1], [0, 0, 1, 1], [], []>} : vector<8x8xbf16>, vector<8x16xbf16>, vector<8x16xf32> -> vector<8x16xf32>
    %50 = tpu.reciprocal %47 {approx = true} : vector<8x1xf32> -> vector<8x1xf32>
    %51 = vector.broadcast %50 : vector<8x1xf32> to vector<8x16xf32>
    %52 = arith.mulf %49, %51 : vector<8x16xf32>
    %53 = tpu.concatenate %27, %52 in 1 : vector<8x16xf32>, vector<8x16xf32> -> vector<8x32xf32>
    %54 = arith.truncf %53 : vector<8x32xf32> to vector<8x32xbf16>
    %c0_23 = arith.constant 0 : index
    %c0_24 = arith.constant 0 : index
    %c0_25 = arith.constant 0 : index
    %55 = vector.load %arg4[%c0_23, %c0_24, %c0_25] : memref<1x8x32xbf16, #tpu.memory_space<vmem>>, vector<1x8x32xbf16>
    %56 = vector.shape_cast %55 : vector<1x8x32xbf16> to vector<8x32xbf16>
    %57 = vector.shape_cast %54 : vector<8x32xbf16> to vector<1x8x32xbf16>
    tpu.vector_store %arg4[%c0_23, %c0_24, %c0_25], %57 {strides = array<i32>} : memref<1x8x32xbf16, #tpu.memory_space<vmem>>, vector<1x8x32xbf16>,
    return
  }
  func.func @transform_0(%arg0: i32, %arg1: i32) -> (i32, i32, i32) {
    %c0_i32 = arith.constant 0 : i32
    %c0_i32_0 = arith.constant 0 : i32
    return %arg0, %arg1, %c0_i32 : i32, i32, i32
  }
  func.func @transform_1(%arg0: i32, %arg1: i32) -> (i32, i32, i32) {
    %c0_i32 = arith.constant 0 : i32
    %c0_i32_0 = arith.constant 0 : i32
    %c0_i32_1 = arith.constant 0 : i32
    return %arg0, %c0_i32, %c0_i32_0 : i32, i32, i32
  }
  func.func @transform_2(%arg0: i32, %arg1: i32) -> (i32, i32, i32) {
    %c0_i32 = arith.constant 0 : i32
    %c0_i32_0 = arith.constant 0 : i32
    return %arg0, %arg1, %c0_i32 : i32, i32, i32
  }
}

module attributes {stable_mosaic.version = 11 : i64} {
  func.func @_linear_kernel(%arg0: i32, %arg1: i32, %arg2: i32, %arg3: memref<16x32xf32, #tpu.memory_space<vmem>>, %arg4: memref<32x128xbf16, #tpu.memory_space<vmem>>, %arg5: memref<1x128xf32, #tpu.memory_space<vmem>>, %arg6: memref<1x32xf32, #tpu.memory_space<vmem>>, %arg7: memref<1x32xf32, #tpu.memory_space<vmem>>, %arg8: memref<16x128xbf16, #tpu.memory_space<vmem>>) attributes {dimension_semantics = [#tpu.dimension_semantics<parallel>, #tpu.dimension_semantics<parallel>, #tpu.dimension_semantics<arbitrary>], iteration_bounds = array<i64: 1, 1, 1>, scalar_prefetch = 0 : i64, scratch_operands = 0 : i64, tpu.core_type = #tpu.core_type<tc>, window_params = [{transform_indices = @transform_0, window_bounds = array<i64: 16, 32>}, {transform_indices = @transform_1, window_bounds = array<i64: 32, 128>}, {transform_indices = @transform_2, window_bounds = array<i64: 1, 128>}, {pipeline_mode = #tpu.pipeline_mode<synchronous>, transform_indices = @transform_3, window_bounds = array<i64: 1, 32>}, {pipeline_mode = #tpu.pipeline_mode<synchronous>, transform_indices = @transform_4, window_bounds = array<i64: 1, 32>}, {transform_indices = @transform_5, window_bounds = array<i64: 16, 128>}]} {
    %c0 = arith.constant 0 : index
    %c0_0 = arith.constant 0 : index
    %0 = vector.load %arg3[%c0, %c0_0] : memref<16x32xf32, #tpu.memory_space<vmem>>, vector<16x32xf32>
    %cst = arith.constant dense<0.000000e+00> : vector<16xf32>
    %1 = vector.multi_reduction <add>, %0, %cst [1] : vector<16x32xf32> to vector<16xf32>
    %2 = vector.shape_cast %1 : vector<16xf32> to vector<16x1xf32>
    %cst_1 = arith.constant 3.200000e+01 : f32
    %3 = vector.broadcast %cst_1 : f32 to vector<16x1xf32>
    %4 = arith.divf %2, %3 : vector<16x1xf32>
    %5 = vector.broadcast %4 : vector<16x1xf32> to vector<16x32xf32>
    %6 = arith.subf %0, %5 : vector<16x32xf32>
    %7 = arith.mulf %6, %6 : vector<16x32xf32>
    %cst_2 = arith.constant dense<0.000000e+00> : vector<16xf32>
    %8 = vector.multi_reduction <add>, %7, %cst_2 [1] : vector<16x32xf32> to vector<16xf32>
    %9 = vector.shape_cast %8 : vector<16xf32> to vector<16x1xf32>
    %cst_3 = arith.constant 3.200000e+01 : f32
    %10 = vector.broadcast %cst_3 : f32 to vector<16x1xf32>
    %11 = arith.divf %9, %10 : vector<16x1xf32>
    %cst_4 = arith.constant 9.99999974E-6 : f32
    %12 = vector.broadcast %cst_4 : f32 to vector<16x1xf32>
    %13 = arith.addf %11, %12 : vector<16x1xf32>
    %14 = math.rsqrt %13 : vector<16x1xf32>
    %15 = vector.broadcast %14 : vector<16x1xf32> to vector<16x32xf32>
    %16 = arith.mulf %6, %15 : vector<16x32xf32>
    %c0_5 = arith.constant 0 : index
    %c0_6 = arith.constant 0 : index
    %17 = vector.load %arg6[%c0_5, %c0_6] : memref<1x32xf32, #tpu.memory_space<vmem>>, vector<1x32xf32>
    %18 = vector.broadcast %17 : vector<1x32xf32> to vector<16x32xf32>
    %19 = arith.mulf %16, %18 : vector<16x32xf32>
    %c0_7 = arith.constant 0 : index
    %c0_8 = arith.constant 0 : index
    %20 = vector.load %arg7[%c0_7, %c0_8] : memref<1x32xf32, #tpu.memory_space<vmem>>, vector<1x32xf32>
    %21 = vector.broadcast %20 : vector<1x32xf32> to vector<16x32xf32>
    %22 = arith.addf %19, %21 : vector<16x32xf32>
    %23 = arith.truncf %22 : vector<16x32xf32> to vector<16x32xbf16>
    %c0_9 = arith.constant 0 : index
    %c0_10 = arith.constant 0 : index
    %24 = vector.load %arg4[%c0_9, %c0_10] : memref<32x128xbf16, #tpu.memory_space<vmem>>, vector<32x128xbf16>
    %cst_11 = arith.constant dense<0.000000e+00> : vector<16x128xf32>
    %25 = tpu.matmul %23, %24, %cst_11 {dimension_numbers = #tpu.dot_dimension_numbers<[1], [0], [0], [1], [0, 0, 1, 1], [], []>} : vector<16x32xbf16>, vector<32x128xbf16>, vector<16x128xf32> -> vector<16x128xf32>
    %c0_12 = arith.constant 0 : index
    %c0_13 = arith.constant 0 : index
    %26 = vector.load %arg5[%c0_12, %c0_13] : memref<1x128xf32, #tpu.memory_space<vmem>>, vector<1x128xf32>
    %27 = vector.broadcast %26 : vector<1x128xf32> to vector<16x128xf32>
    %28 = arith.addf %25, %27 : vector<16x128xf32>
    %cst_14 = arith.constant 5.000000e-01 : f32
    %29 = vector.broadcast %cst_14 : f32 to vector<16x128xf32>
    %30 = arith.mulf %29, %28 : vector<16x128xf32>
    %cst_15 = arith.constant 4.471500e-02 : f32
    %31 = vector.broadcast %cst_15 : f32 to vector<16x128xf32>
    %32 = arith.mulf %31, %28 : vector<16x128xf32>
    %33 = arith.mulf %32, %28 : vector<16x128xf32>
    %34 = arith.mulf %33, %28 : vector<16x128xf32>
    %35 = arith.addf %28, %34 : vector<16x128xf32>
    %cst_16 = arith.constant 0.797884583 : f32
    %36 = vector.broadcast %cst_16 : f32 to vector<16x128xf32>
    %37 = arith.mulf %36, %35 : vector<16x128xf32>
    %38 = math.tanh %37 : vector<16x128xf32>
    %cst_17 = arith.constant 1.000000e+00 : f32
    %39 = vector.broadcast %cst_17 : f32 to vector<16x128xf32>
    %40 = arith.addf %39, %38 : vector<16x128xf32>
    %41 = arith.mulf %30, %40 : vector<16x128xf32>
    %42 = arith.truncf %41 : vector<16x128xf32> to vector<16x128xbf16>
    %c0_18 = arith.constant 0 : index
    %c0_19 = arith.constant 0 : index
    %43 = vector.load %arg8[%c0_18, %c0_19] : memref<16x128xbf16, #tpu.memory_space<vmem>>, vector<16x128xbf16>
    tpu.vector_store %arg8[%c0_18, %c0_19], %42 {strides = array<i32>} : memref<16x128xbf16, #tpu.memory_space<vmem>>, vector<16x128xbf16>,
    return
  }
  func.func @transform_0(%arg0: i32, %arg1: i32, %arg2: i32) -> (i32, i32) {
    %c0_i32 = arith.constant 0 : i32
    return %arg0, %arg2 : i32, i32
  }
  func.func @transform_1(%arg0: i32, %arg1: i32, %arg2: i32) -> (i32, i32) {
    %c0_i32 = arith.constant 0 : i32
    return %arg2, %arg1 : i32, i32
  }
  func.func @transform_2(%arg0: i32, %arg1: i32, %arg2: i32) -> (i32, i32) {
    %c0_i32 = arith.constant 0 : i32
    %c0_i32_0 = arith.constant 0 : i32
    return %c0_i32, %arg1 : i32, i32
  }
  func.func @transform_3(%arg0: i32, %arg1: i32, %arg2: i32) -> (i32, i32) {
    %c0_i32 = arith.constant 0 : i32
    %c0_i32_0 = arith.constant 0 : i32
    %c0_i32_1 = arith.constant 0 : i32
    return %c0_i32, %c0_i32_0 : i32, i32
  }
  func.func @transform_4(%arg0: i32, %arg1: i32, %arg2: i32) -> (i32, i32) {
    %c0_i32 = arith.constant 0 : i32
    %c0_i32_0 = arith.constant 0 : i32
    %c0_i32_1 = arith.constant 0 : i32
    return %c0_i32, %c0_i32_0 : i32, i32
  }
  func.func @transform_5(%arg0: i32, %arg1: i32, %arg2: i32) -> (i32, i32) {
    %c0_i32 = arith.constant 0 : i32
    return %arg0, %arg1 : i32, i32
  }
}

module attributes {stable_mosaic.version = 11 : i64} {
  func.func @_linear_kernel(%arg0: i32, %arg1: i32, %arg2: i32, %arg3: memref<16x32xbf16, #tpu.memory_space<vmem>>, %arg4: memref<32x128xbf16, #tpu.memory_space<vmem>>, %arg5: memref<1x128xf32, #tpu.memory_space<vmem>>, %arg6: memref<16x128xf32, #tpu.memory_space<vmem>>, %arg7: memref<16x128xf32, #tpu.memory_space<vmem>>) attributes {dimension_semantics = [#tpu.dimension_semantics<parallel>, #tpu.dimension_semantics<parallel>, #tpu.dimension_semantics<arbitrary>], iteration_bounds = array<i64: 1, 1, 1>, scalar_prefetch = 0 : i64, scratch_operands = 0 : i64, tpu.core_type = #tpu.core_type<tc>, window_params = [{transform_indices = @transform_0, window_bounds = array<i64: 16, 32>}, {transform_indices = @transform_1, window_bounds = array<i64: 32, 128>}, {transform_indices = @transform_2, window_bounds = array<i64: 1, 128>}, {transform_indices = @transform_3, window_bounds = array<i64: 16, 128>}, {transform_indices = @transform_4, window_bounds = array<i64: 16, 128>}]} {
    %c0 = arith.constant 0 : index
    %c0_0 = arith.constant 0 : index
    %0 = vector.load %arg3[%c0, %c0_0] : memref<16x32xbf16, #tpu.memory_space<vmem>>, vector<16x32xbf16>
    %c0_1 = arith.constant 0 : index
    %c0_2 = arith.constant 0 : index
    %1 = vector.load %arg4[%c0_1, %c0_2] : memref<32x128xbf16, #tpu.memory_space<vmem>>, vector<32x128xbf16>
    %cst = arith.constant dense<0.000000e+00> : vector<16x128xf32>
    %2 = tpu.matmul %0, %1, %cst {dimension_numbers = #tpu.dot_dimension_numbers<[1], [0], [0], [1], [0, 0, 1, 1], [], []>} : vector<16x32xbf16>, vector<32x128xbf16>, vector<16x128xf32> -> vector<16x128xf32>
    %c0_3 = arith.constant 0 : index
    %c0_4 = arith.constant 0 : index
    %3 = vector.load %arg5[%c0_3, %c0_4] : memref<1x128xf32, #tpu.memory_space<vmem>>, vector<1x128xf32>
    %4 = vector.broadcast %3 : vector<1x128xf32> to vector<16x128xf32>
    %5 = arith.addf %2, %4 : vector<16x128xf32>
    %c0_5 = arith.constant 0 : index
    %c0_6 = arith.constant 0 : index
    %6 = vector.load %arg6[%c0_5, %c0_6] : memref<16x128xf32, #tpu.memory_space<vmem>>, vector<16x128xf32>
    %7 = arith.addf %5, %6 : vector<16x128xf32>
    %c0_7 = arith.constant 0 : index
    %c0_8 = arith.constant 0 : index
    %8 = vector.load %arg7[%c0_7, %c0_8] : memref<16x128xf32, #tpu.memory_space<vmem>>, vector<16x128xf32>
    tpu.vector_store %arg7[%c0_7, %c0_8], %7 {strides = array<i32>} : memref<16x128xf32, #tpu.memory_space<vmem>>, vector<16x128xf32>,
    return
  }
  func.func @transform_0(%arg0: i32, %arg1: i32, %arg2: i32) -> (i32, i32) {
    %c0_i32 = arith.constant 0 : i32
    return %arg0, %arg2 : i32, i32
  }
  func.func @transform_1(%arg0: i32, %arg1: i32, %arg2: i32) -> (i32, i32) {
    %c0_i32 = arith.constant 0 : i32
    return %arg2, %arg1 : i32, i32
  }
  func.func @transform_2(%arg0: i32, %arg1: i32, %arg2: i32) -> (i32, i32) {
    %c0_i32 = arith.constant 0 : i32
    %c0_i32_0 = arith.constant 0 : i32
    return %c0_i32, %arg1 : i32, i32
  }
  func.func @transform_3(%arg0: i32, %arg1: i32, %arg2: i32) -> (i32, i32) {
    %c0_i32 = arith.constant 0 : i32
    return %arg0, %arg1 : i32, i32
  }
  func.func @transform_4(%arg0: i32, %arg1: i32, %arg2: i32) -> (i32, i32) {
    %c0_i32 = arith.constant 0 : i32
    return %arg0, %arg1 : i32, i32
  }
}

module attributes {stable_mosaic.version = 11 : i64} {
  func.func @_linear_kernel(%arg0: i32, %arg1: i32, %arg2: i32, %arg3: memref<16x128xbf16, #tpu.memory_space<vmem>>, %arg4: memref<128x128xbf16, #tpu.memory_space<vmem>>, %arg5: memref<1x128xf32, #tpu.memory_space<vmem>>, %arg6: memref<16x128xf32, #tpu.memory_space<vmem>>, %arg7: memref<16x128xf32, #tpu.memory_space<vmem>>) attributes {dimension_semantics = [#tpu.dimension_semantics<parallel>, #tpu.dimension_semantics<parallel>, #tpu.dimension_semantics<arbitrary>], iteration_bounds = array<i64: 1, 1, 1>, scalar_prefetch = 0 : i64, scratch_operands = 0 : i64, tpu.core_type = #tpu.core_type<tc>, window_params = [{transform_indices = @transform_0, window_bounds = array<i64: 16, 128>}, {transform_indices = @transform_1, window_bounds = array<i64: 128, 128>}, {transform_indices = @transform_2, window_bounds = array<i64: 1, 128>}, {transform_indices = @transform_3, window_bounds = array<i64: 16, 128>}, {transform_indices = @transform_4, window_bounds = array<i64: 16, 128>}]} {
    %c0 = arith.constant 0 : index
    %c0_0 = arith.constant 0 : index
    %0 = vector.load %arg3[%c0, %c0_0] : memref<16x128xbf16, #tpu.memory_space<vmem>>, vector<16x128xbf16>
    %c0_1 = arith.constant 0 : index
    %c0_2 = arith.constant 0 : index
    %1 = vector.load %arg4[%c0_1, %c0_2] : memref<128x128xbf16, #tpu.memory_space<vmem>>, vector<128x128xbf16>
    %cst = arith.constant dense<0.000000e+00> : vector<16x128xf32>
    %2 = tpu.matmul %0, %1, %cst {dimension_numbers = #tpu.dot_dimension_numbers<[1], [0], [0], [1], [0, 0, 1, 1], [], []>} : vector<16x128xbf16>, vector<128x128xbf16>, vector<16x128xf32> -> vector<16x128xf32>
    %c0_3 = arith.constant 0 : index
    %c0_4 = arith.constant 0 : index
    %3 = vector.load %arg5[%c0_3, %c0_4] : memref<1x128xf32, #tpu.memory_space<vmem>>, vector<1x128xf32>
    %4 = vector.broadcast %3 : vector<1x128xf32> to vector<16x128xf32>
    %5 = arith.addf %2, %4 : vector<16x128xf32>
    %c0_5 = arith.constant 0 : index
    %c0_6 = arith.constant 0 : index
    %6 = vector.load %arg6[%c0_5, %c0_6] : memref<16x128xf32, #tpu.memory_space<vmem>>, vector<16x128xf32>
    %7 = arith.addf %5, %6 : vector<16x128xf32>
    %c0_7 = arith.constant 0 : index
    %c0_8 = arith.constant 0 : index
    %8 = vector.load %arg7[%c0_7, %c0_8] : memref<16x128xf32, #tpu.memory_space<vmem>>, vector<16x128xf32>
    tpu.vector_store %arg7[%c0_7, %c0_8], %7 {strides = array<i32>} : memref<16x128xf32, #tpu.memory_space<vmem>>, vector<16x128xf32>,
    return
  }
  func.func @transform_0(%arg0: i32, %arg1: i32, %arg2: i32) -> (i32, i32) {
    %c0_i32 = arith.constant 0 : i32
    return %arg0, %arg2 : i32, i32
  }
  func.func @transform_1(%arg0: i32, %arg1: i32, %arg2: i32) -> (i32, i32) {
    %c0_i32 = arith.constant 0 : i32
    return %arg2, %arg1 : i32, i32
  }
  func.func @transform_2(%arg0: i32, %arg1: i32, %arg2: i32) -> (i32, i32) {
    %c0_i32 = arith.constant 0 : i32
    %c0_i32_0 = arith.constant 0 : i32
    return %c0_i32, %arg1 : i32, i32
  }
  func.func @transform_3(%arg0: i32, %arg1: i32, %arg2: i32) -> (i32, i32) {
    %c0_i32 = arith.constant 0 : i32
    return %arg0, %arg1 : i32, i32
  }
  func.func @transform_4(%arg0: i32, %arg1: i32, %arg2: i32) -> (i32, i32) {
    %c0_i32 = arith.constant 0 : i32
    return %arg0, %arg1 : i32, i32
  }
}

module attributes {stable_mosaic.version = 11 : i64} {
  func.func @_linear_kernel(%arg0: i32, %arg1: i32, %arg2: i32, %arg3: memref<8x32xf32, #tpu.memory_space<vmem>>, %arg4: memref<32x128xbf16, #tpu.memory_space<vmem>>, %arg5: memref<1x32xf32, #tpu.memory_space<vmem>>, %arg6: memref<1x32xf32, #tpu.memory_space<vmem>>, %arg7: memref<8x128xf32, #tpu.memory_space<vmem>>) attributes {dimension_semantics = [#tpu.dimension_semantics<parallel>, #tpu.dimension_semantics<parallel>, #tpu.dimension_semantics<arbitrary>], iteration_bounds = array<i64: 1, 1, 1>, scalar_prefetch = 0 : i64, scratch_operands = 0 : i64, tpu.core_type = #tpu.core_type<tc>, window_params = [{transform_indices = @transform_0, window_bounds = array<i64: 8, 32>}, {transform_indices = @transform_1, window_bounds = array<i64: 32, 128>}, {pipeline_mode = #tpu.pipeline_mode<synchronous>, transform_indices = @transform_2, window_bounds = array<i64: 1, 32>}, {pipeline_mode = #tpu.pipeline_mode<synchronous>, transform_indices = @transform_3, window_bounds = array<i64: 1, 32>}, {transform_indices = @transform_4, window_bounds = array<i64: 8, 128>}]} {
    %c0 = arith.constant 0 : index
    %c0_0 = arith.constant 0 : index
    %0 = vector.load %arg3[%c0, %c0_0] : memref<8x32xf32, #tpu.memory_space<vmem>>, vector<8x32xf32>
    %cst = arith.constant dense<0.000000e+00> : vector<8xf32>
    %1 = vector.multi_reduction <add>, %0, %cst [1] : vector<8x32xf32> to vector<8xf32>
    %2 = vector.shape_cast %1 : vector<8xf32> to vector<8x1xf32>
    %cst_1 = arith.constant 3.200000e+01 : f32
    %3 = vector.broadcast %cst_1 : f32 to vector<8x1xf32>
    %4 = arith.divf %2, %3 : vector<8x1xf32>
    %5 = vector.broadcast %4 : vector<8x1xf32> to vector<8x32xf32>
    %6 = arith.subf %0, %5 : vector<8x32xf32>
    %7 = arith.mulf %6, %6 : vector<8x32xf32>
    %cst_2 = arith.constant dense<0.000000e+00> : vector<8xf32>
    %8 = vector.multi_reduction <add>, %7, %cst_2 [1] : vector<8x32xf32> to vector<8xf32>
    %9 = vector.shape_cast %8 : vector<8xf32> to vector<8x1xf32>
    %cst_3 = arith.constant 3.200000e+01 : f32
    %10 = vector.broadcast %cst_3 : f32 to vector<8x1xf32>
    %11 = arith.divf %9, %10 : vector<8x1xf32>
    %cst_4 = arith.constant 9.99999974E-6 : f32
    %12 = vector.broadcast %cst_4 : f32 to vector<8x1xf32>
    %13 = arith.addf %11, %12 : vector<8x1xf32>
    %14 = math.rsqrt %13 : vector<8x1xf32>
    %15 = vector.broadcast %14 : vector<8x1xf32> to vector<8x32xf32>
    %16 = arith.mulf %6, %15 : vector<8x32xf32>
    %c0_5 = arith.constant 0 : index
    %c0_6 = arith.constant 0 : index
    %17 = vector.load %arg5[%c0_5, %c0_6] : memref<1x32xf32, #tpu.memory_space<vmem>>, vector<1x32xf32>
    %18 = vector.broadcast %17 : vector<1x32xf32> to vector<8x32xf32>
    %19 = arith.mulf %16, %18 : vector<8x32xf32>
    %c0_7 = arith.constant 0 : index
    %c0_8 = arith.constant 0 : index
    %20 = vector.load %arg6[%c0_7, %c0_8] : memref<1x32xf32, #tpu.memory_space<vmem>>, vector<1x32xf32>
    %21 = vector.broadcast %20 : vector<1x32xf32> to vector<8x32xf32>
    %22 = arith.addf %19, %21 : vector<8x32xf32>
    %23 = arith.truncf %22 : vector<8x32xf32> to vector<8x32xbf16>
    %c0_9 = arith.constant 0 : index
    %c0_10 = arith.constant 0 : index
    %24 = vector.load %arg4[%c0_9, %c0_10] : memref<32x128xbf16, #tpu.memory_space<vmem>>, vector<32x128xbf16>
    %cst_11 = arith.constant dense<0.000000e+00> : vector<8x128xf32>
    %25 = tpu.matmul %23, %24, %cst_11 {dimension_numbers = #tpu.dot_dimension_numbers<[1], [0], [0], [1], [0, 0, 1, 1], [], []>} : vector<8x32xbf16>, vector<32x128xbf16>, vector<8x128xf32> -> vector<8x128xf32>
    %c0_12 = arith.constant 0 : index
    %c0_13 = arith.constant 0 : index
    %26 = vector.load %arg7[%c0_12, %c0_13] : memref<8x128xf32, #tpu.memory_space<vmem>>, vector<8x128xf32>
    tpu.vector_store %arg7[%c0_12, %c0_13], %25 {strides = array<i32>} : memref<8x128xf32, #tpu.memory_space<vmem>>, vector<8x128xf32>,
    return
  }
  func.func @transform_0(%arg0: i32, %arg1: i32, %arg2: i32) -> (i32, i32) {
    %c0_i32 = arith.constant 0 : i32
    return %arg0, %arg2 : i32, i32
  }
  func.func @transform_1(%arg0: i32, %arg1: i32, %arg2: i32) -> (i32, i32) {
    %c0_i32 = arith.constant 0 : i32
    return %arg2, %arg1 : i32, i32
  }
  func.func @transform_2(%arg0: i32, %arg1: i32, %arg2: i32) -> (i32, i32) {
    %c0_i32 = arith.constant 0 : i32
    %c0_i32_0 = arith.constant 0 : i32
    %c0_i32_1 = arith.constant 0 : i32
    return %c0_i32, %c0_i32_0 : i32, i32
  }
  func.func @transform_3(%arg0: i32, %arg1: i32, %arg2: i32) -> (i32, i32) {
    %c0_i32 = arith.constant 0 : i32
    %c0_i32_0 = arith.constant 0 : i32
    %c0_i32_1 = arith.constant 0 : i32
    return %c0_i32, %c0_i32_0 : i32, i32
  }
  func.func @transform_4(%arg0: i32, %arg1: i32, %arg2: i32) -> (i32, i32) {
    %c0_i32 = arith.constant 0 : i32
    return %arg0, %arg1 : i32, i32
  }
}

</mosaic_0001>

<llo_original>
// kernel: _lambda_.14
$region0: #{_lambda_.14}
  #allocation0 [shape = 'u32[]', space=smem, size = 0x4, offset = 0x4, fixed_abs, tag = 'smem constant byte address 0x4 - core index']
  #allocation1 [shape = 'u32[144,128]{1,0:T(1,128)}', space=vmem, size = 0x12000, scoped, tag = 'internal scratch']
  %s0 = inlined_call_operand.vmem [shape: f32[16,32], index: 0, kind: input, shape index: {}]
  %s1 = inlined_call_operand.vmem [shape: f32[1,32], index: 1, kind: input, shape index: {}]
  %s2 = inlined_call_operand.vmem [shape: f32[1,32], index: 2, kind: input, shape index: {}]
  %s3 = inlined_call_operand.vmem [shape: f32[16,32], index: 3, kind: output, shape index: {}]
  %s4 = sld [smem:[#allocation0]]
  $region22: #{_lambda_.14} parent=0
    _
  %s6 = ssub.s32 1, %s4
  %s7 = scalar_select 0, %s6, %s4
  // Predicated region
  $region2: #{_lambda_.14} parent=0 // pred_check
    _
  $region3: #{_lambda_.14} parent=0 // pred_check_branch
    %9 = sbr.rel (0) target = $region5
  $region4: #{_lambda_.14} parent=0 // pred_region
    _
  $region5: #{_lambda_.14} parent=0 // pred_fallthru
    _
  // Predicated region
  $region6: #{_lambda_.14} parent=0 // pred_check
    _
  $region7: #{_lambda_.14} parent=0 // pred_check_branch
    %11 = sbr.rel (0) target = $region9
  $region8: #{_lambda_.14} parent=0 // pred_region
    _
  $region9: #{_lambda_.14} parent=0 // pred_fallthru
    _
  // Predicated region
  $region10: #{_lambda_.14} parent=0 // pred_check
    _
  $region11: #{_lambda_.14} parent=0 // pred_check_branch
    %13 = sbr.rel (0) target = $region13
  $region12: #{_lambda_.14} parent=0 // pred_region
    _
  $region13: #{_lambda_.14} parent=0 // pred_fallthru
    _
  %v14 = vld [vmem:[%s0] sm:$0xff]
  %v15 = vld [vmem:[%s0 + $0x8] sm:$0xff]
  %vm16 = vcmask 261120
  %v17 = vsel %vm16, %v14, 0.0
  %18 = vadd.xlane.f32.xlu0 %v17
  %v19 = vpop.xlane.xlu0 %18
  %v20 = vsel %vm16, %v15, 0.0
  %21 = vadd.xlane.f32.xlu0 %v20
  %v22 = vpop.xlane.xlu0 %21
  %v23 = vrcp.pop 32.0
  %v24 = vmul.f32 %v19, %v23
  %v25 = vmul.f32 %v22, %v23
  %v26 = vsub.f32 %v14, %v24
  %v27 = vsub.f32 %v15, %v25
  %v28 = vmul.f32 %v26, %v26
  %v29 = vmul.f32 %v27, %v27
  %v30 = vsel %vm16, %v28, 0.0
  %31 = vadd.xlane.f32.xlu0 %v30
  %v32 = vpop.xlane.xlu0 %31
  %v33 = vsel %vm16, %v29, 0.0
  %34 = vadd.xlane.f32.xlu0 %v33
  %v35 = vpop.xlane.xlu0 %34
  %v36 = vmul.f32 %v32, %v23
  %v37 = vmul.f32 %v35, %v23
  %v38 = vadd.f32 %v36, 1e-05
  %v39 = vadd.f32 %v37, 1e-05
  %v40 = vrsqrt.pop %v38
  %v41 = vrsqrt.pop %v39
  %v42 = vmul.f32 %v26, %v40
  %v43 = vmul.f32 %v27, %v41
  %v44 = vld [vmem:[%s1] sm:$0x1]
  %v46 = vlaneseq
  %v47 = vshrl.u32 %v46, 7
  %v48 = vsub.s32 0, %v47
  %v49 = vrot.slane %v44, %v48
  %v51 = vmul.f32 %v42, %v49
  %v52 = vmul.f32 %v43, %v49
  %v53 = vld [vmem:[%s2] sm:$0x1]
  %v55 = vlaneseq
  %v56 = vshrl.u32 %v55, 7
  %v57 = vsub.s32 0, %v56
  %v58 = vrot.slane %v53, %v57
  %v60 = vadd.f32 %v51, %v58
  %v61 = vadd.f32 %v52, %v58
  %62 = vst.msk [vmem:[%s3] sm:$0xff] %vm16, %v60
  %63 = vst.msk [vmem:[%s3 + $0x8] sm:$0xff] %vm16, %v61
  // Predicated region
  $region14: #{_lambda_.14} parent=0 // pred_check
    _
  $region15: #{_lambda_.14} parent=0 // pred_check_branch
    %65 = sbr.rel (0) target = $region17
  $region16: #{_lambda_.14} parent=0 // pred_region
    _
  $region17: #{_lambda_.14} parent=0 // pred_fallthru
    _
  // Predicated region
  $region18: #{_lambda_.14} parent=0 // pred_check
    _
  $region19: #{_lambda_.14} parent=0 // pred_check_branch
    %67 = sbr.rel (0) target = $region21
  $region20: #{_lambda_.14} parent=0 // pred_region
    _
  $region21: #{_lambda_.14} parent=0 // pred_fallthru
    _

// kernel: _lambda_.13
$region0: #{_lambda_.13}
  #allocation0 [shape = 'u32[]', space=smem, size = 0x4, offset = 0x4, fixed_abs, tag = 'smem constant byte address 0x4 - core index']
  #allocation1 [shape = 'u32[144,128]{1,0:T(1,128)}', space=vmem, size = 0x12000, scoped, tag = 'internal scratch']
  %s0 = inlined_call_operand.vmem [shape: f32[8,192], index: 0, kind: input, shape index: {}]
  %s1 = inlined_call_operand.vmem [shape: bf16[192,128], index: 1, kind: input, shape index: {}]
  %s2 = inlined_call_operand.vmem [shape: f32[8,128], index: 2, kind: output, shape index: {}]
  %s3 = sld [smem:[#allocation0]]
  $region18: #{_lambda_.13} parent=0
    _
  %s5 = ssub.s32 1, %s3
  %s6 = scalar_select 0, %s5, %s3
  // Predicated region
  $region2: #{_lambda_.13} parent=0 // pred_check
    _
  $region3: #{_lambda_.13} parent=0 // pred_check_branch
    %8 = sbr.rel (0) target = $region5
  $region4: #{_lambda_.13} parent=0 // pred_region
    _
  $region5: #{_lambda_.13} parent=0 // pred_fallthru
    _
  // Predicated region
  $region6: #{_lambda_.13} parent=0 // pred_check
    _
  $region7: #{_lambda_.13} parent=0 // pred_check_branch
    %10 = sbr.rel (0) target = $region9
  $region8: #{_lambda_.13} parent=0 // pred_region
    _
  $region9: #{_lambda_.13} parent=0 // pred_fallthru
    _
  %v12 = vld [vmem:[%s0] sm:$0xff]
  %v13 = vld [vmem:[%s0 + $0x8] sm:$0xff]
  %v14 = vpack.c.bf16 %v12, %v12
  %v15 = vpack.c.bf16 %v13, %v13
  %v16 = vld [vmem:[%s1] sm:$0xf]
  %v17 = vld [vmem:[%s1 + $0x4] sm:$0xf]
  %v18 = vld [vmem:[%s1 + $0x8] sm:$0xf]
  %v19 = vld [vmem:[%s1 + $0xc] sm:$0xf]
  %v20 = vld [vmem:[%s1 + $0x10] sm:$0xf]
  %v21 = vld [vmem:[%s1 + $0x14] sm:$0xf]
  %v22 = vld [vmem:[%s1 + $0x18] sm:$0xf]
  %v23 = vld [vmem:[%s1 + $0x1c] sm:$0xf]
  %v24 = vld [vmem:[%s1 + $0x20] sm:$0xf]
  %v25 = vld [vmem:[%s1 + $0x24] sm:$0xf]
  %v26 = vld [vmem:[%s1 + $0x28] sm:$0xf]
  %v27 = vld [vmem:[%s1 + $0x2c] sm:$0xf]
  %v28 = vld [vmem:[%s1 + $0x30] sm:$0xf]
  %v29 = vld [vmem:[%s1 + $0x34] sm:$0xf]
  %v30 = vld [vmem:[%s1 + $0x38] sm:$0xf]
  %v31 = vld [vmem:[%s1 + $0x3c] sm:$0xf]
  %v32 = vld [vmem:[%s1 + $0x40] sm:$0xf]
  %v33 = vld [vmem:[%s1 + $0x44] sm:$0xf]
  %v34 = vld [vmem:[%s1 + $0x48] sm:$0xf]
  %v35 = vld [vmem:[%s1 + $0x4c] sm:$0xf]
  %v36 = vld [vmem:[%s1 + $0x50] sm:$0xf]
  %v37 = vld [vmem:[%s1 + $0x54] sm:$0xf]
  %v38 = vld [vmem:[%s1 + $0x58] sm:$0xf]
  %v39 = vld [vmem:[%s1 + $0x5c] sm:$0xf]
  %v64 = vunpack.c.l.b16 %v16
  %v65 = vunpack.c.l.b16 %v17
  %v66 = vunpack.c.l.b16 %v18
  %v67 = vunpack.c.l.b16 %v19
  %v68 = vunpack.c.l.b16 %v20
  %v69 = vunpack.c.l.b16 %v21
  %v70 = vunpack.c.l.b16 %v22
  %v71 = vunpack.c.l.b16 %v23
  %v72 = vunpack.c.l.b16 %v24
  %v73 = vunpack.c.l.b16 %v25
  %v74 = vunpack.c.l.b16 %v26
  %v75 = vunpack.c.l.b16 %v27
  %v76 = vunpack.c.l.b16 %v28
  %v77 = vunpack.c.l.b16 %v29
  %v78 = vunpack.c.l.b16 %v30
  %v79 = vunpack.c.l.b16 %v31
  %v80 = vunpack.c.l.b16 %v32
  %v81 = vunpack.c.l.b16 %v33
  %v82 = vunpack.c.l.b16 %v34
  %v83 = vunpack.c.l.b16 %v35
  %v84 = vunpack.c.l.b16 %v36
  %v85 = vunpack.c.l.b16 %v37
  %v86 = vunpack.c.l.b16 %v38
  %v87 = vunpack.c.l.b16 %v39
  %v88 = vpack.c.b16 %v65, %v64
  %v89 = vpack.c.b16 %v67, %v66
  %v90 = vpack.c.b16 %v69, %v68
  %v91 = vpack.c.b16 %v71, %v70
  %v92 = vpack.c.b16 %v73, %v72
  %v93 = vpack.c.b16 %v75, %v74
  %v94 = vpack.c.b16 %v77, %v76
  %v95 = vpack.c.b16 %v79, %v78
  %v96 = vpack.c.b16 %v81, %v80
  %v97 = vpack.c.b16 %v83, %v82
  %v98 = vpack.c.b16 %v85, %v84
  %v99 = vpack.c.b16 %v87, %v86
  %vm112 = vcmask 523264
  %v114 = vsel %vm112, %v15, 0
  %116 = vmatprep.subr.bf16.mxu0 0
  %117 = vmatpush1.bf16.msra.mxu0 %v95
  %118 = vmatprep.subr.bf16.mxu0 0
  %119 = vmatpush1.bf16.msra.mxu0 %v94
  %120 = vmatprep.subr.bf16.mxu0 0
  %121 = vmatpush1.bf16.msra.mxu0 %v93
  %122 = vmatprep.subr.bf16.mxu0 0
  %123 = vmatpush1.bf16.msra.mxu0 %v92
  %124 = vmatprep.subr.bf16.mxu0 0
  %125 = vmatpush1.bf16.msra.mxu0 %v91
  %126 = vmatprep.subr.bf16.mxu0 0
  %127 = vmatpush1.bf16.msra.mxu0 %v90
  %128 = vmatprep.subr.bf16.mxu0 0
  %129 = vmatpush1.bf16.msra.mxu0 %v89
  %130 = vmatprep.subr.bf16.mxu0 0
  %131 = vmatpush1.bf16.msra.mxu0 %v88
  %132 = vmatprep.subr.bf16.mxu0 0
  %133 = vmatpush2.bf16.msra.mxu0 0
  %134 = vmatprep.subr.bf16.mxu0 0
  %135 = vmatpush2.bf16.msra.mxu0 0
  %136 = vmatprep.subr.bf16.mxu0 0
  %137 = vmatpush2.bf16.msra.mxu0 0
  %138 = vmatprep.subr.bf16.mxu0 0
  %139 = vmatpush2.bf16.msra.mxu0 0
  %140 = vmatprep.subr.bf16.mxu0 0
  %141 = vmatpush2.bf16.msra.mxu0 %v99
  %142 = vmatprep.subr.bf16.mxu0 0
  %143 = vmatpush2.bf16.msra.mxu0 %v98
  %144 = vmatprep.subr.bf16.mxu0 0
  %145 = vmatpush2.bf16.msra.mxu0 %v97
  %146 = vmatprep.subr.bf16.mxu0 0
  %147 = vmatpush2.bf16.msra.mxu0 %v96
  %148 = vmatprep.mubr.bf16.mxu0 %v114
  %149 = vmatmul.mubr.bf16.gmra.mxu0 %v14
  %v150 = vpop.f32.mrf.mxu0
  %v151 = vadd.f32 0.0, %v150
  %v152 = vpop.f32.mrf.mxu0
  %v153 = vpop.f32.mrf.mxu0
  %v154 = vpop.f32.mrf.mxu0
  %155 = vdwg.mxu0
  %156 = vst [vmem:[%s2] sm:$0xff] %v151
  // Predicated region
  $region10: #{_lambda_.13} parent=0 // pred_check
    _
  $region11: #{_lambda_.13} parent=0 // pred_check_branch
    %158 = sbr.rel (0) target = $region13
  $region12: #{_lambda_.13} parent=0 // pred_region
    _
  $region13: #{_lambda_.13} parent=0 // pred_fallthru
    _
  // Predicated region
  $region14: #{_lambda_.13} parent=0 // pred_check
    _
  $region15: #{_lambda_.13} parent=0 // pred_check_branch
    %160 = sbr.rel (0) target = $region17
  $region16: #{_lambda_.13} parent=0 // pred_region
    _
  $region17: #{_lambda_.13} parent=0 // pred_fallthru
    _

// kernel: _lambda_.15
$region0: #{_lambda_.15}
  #allocation0 [shape = 'u32[]', space=smem, size = 0x4, offset = 0x4, fixed_abs, tag = 'smem constant byte address 0x4 - core index']
  #allocation1 [shape = 'u32[144,128]{1,0:T(1,128)}', space=vmem, size = 0x12000, scoped, tag = 'internal scratch']
  %s0 = inlined_call_operand.vmem [shape: f32[16,32], index: 0, kind: input, shape index: {}]
  %s1 = inlined_call_operand.vmem [shape: bf16[32,128], index: 1, kind: input, shape index: {}]
  %s2 = inlined_call_operand.vmem [shape: f32[1,128], index: 2, kind: input, shape index: {}]
  %s3 = inlined_call_operand.vmem [shape: f32[1,32], index: 3, kind: input, shape index: {}]
  %s4 = inlined_call_operand.vmem [shape: f32[1,32], index: 4, kind: input, shape index: {}]
  %s5 = inlined_call_operand.vmem [shape: bf16[16,128], index: 5, kind: output, shape index: {}]
  %s6 = sld [smem:[#allocation0]]
  $region30: #{_lambda_.15} parent=0
    _
  %s8 = ssub.s32 1, %s6
  %s9 = scalar_select 0, %s8, %s6
  // Predicated region
  $region2: #{_lambda_.15} parent=0 // pred_check
    _
  $region3: #{_lambda_.15} parent=0 // pred_check_branch
    %11 = sbr.rel (0) target = $region5
  $region4: #{_lambda_.15} parent=0 // pred_region
    _
  $region5: #{_lambda_.15} parent=0 // pred_fallthru
    _
  // Predicated region
  $region6: #{_lambda_.15} parent=0 // pred_check
    _
  $region7: #{_lambda_.15} parent=0 // pred_check_branch
    %13 = sbr.rel (0) target = $region9
  $region8: #{_lambda_.15} parent=0 // pred_region
    _
  $region9: #{_lambda_.15} parent=0 // pred_fallthru
    _
  // Predicated region
  $region10: #{_lambda_.15} parent=0 // pred_check
    _
  $region11: #{_lambda_.15} parent=0 // pred_check_branch
    %15 = sbr.rel (0) target = $region13
  $region12: #{_lambda_.15} parent=0 // pred_region
    _
  $region13: #{_lambda_.15} parent=0 // pred_fallthru
    _
  // Predicated region
  $region14: #{_lambda_.15} parent=0 // pred_check
    _
  $region15: #{_lambda_.15} parent=0 // pred_check_branch
    %17 = sbr.rel (0) target = $region17
  $region16: #{_lambda_.15} parent=0 // pred_region
    _
  $region17: #{_lambda_.15} parent=0 // pred_fallthru
    _
  // Predicated region
  $region18: #{_lambda_.15} parent=0 // pred_check
    _
  $region19: #{_lambda_.15} parent=0 // pred_check_branch
    %19 = sbr.rel (0) target = $region21
  $region20: #{_lambda_.15} parent=0 // pred_region
    _
  $region21: #{_lambda_.15} parent=0 // pred_fallthru
    _
  %v21 = vld [vmem:[%s0] sm:$0xff]
  %v22 = vld [vmem:[%s0 + $0x8] sm:$0xff]
  %vm23 = vcmask 261120
  %v24 = vsel %vm23, %v21, 0.0
  %25 = vadd.xlane.f32.xlu0 %v24
  %v26 = vpop.xlane.xlu0 %25
  %v27 = vsel %vm23, %v22, 0.0
  %28 = vadd.xlane.f32.xlu0 %v27
  %v29 = vpop.xlane.xlu0 %28
  %v30 = vrcp.pop 32.0
  %v31 = vmul.f32 %v26, %v30
  %v32 = vmul.f32 %v29, %v30
  %v33 = vsub.f32 %v21, %v31
  %v34 = vsub.f32 %v22, %v32
  %v35 = vmul.f32 %v33, %v33
  %v36 = vmul.f32 %v34, %v34
  %v37 = vsel %vm23, %v35, 0.0
  %38 = vadd.xlane.f32.xlu0 %v37
  %v39 = vpop.xlane.xlu0 %38
  %v40 = vsel %vm23, %v36, 0.0
  %41 = vadd.xlane.f32.xlu0 %v40
  %v42 = vpop.xlane.xlu0 %41
  %v43 = vmul.f32 %v39, %v30
  %v44 = vmul.f32 %v42, %v30
  %v45 = vadd.f32 %v43, 1e-05
  %v46 = vadd.f32 %v44, 1e-05
  %v47 = vrsqrt.pop %v45
  %v48 = vrsqrt.pop %v46
  %v49 = vmul.f32 %v33, %v47
  %v50 = vmul.f32 %v34, %v48
  %v51 = vld [vmem:[%s3] sm:$0x1]
  %v53 = vlaneseq
  %v54 = vshrl.u32 %v53, 7
  %v55 = vsub.s32 0, %v54
  %v56 = vrot.slane %v51, %v55
  %v58 = vmul.f32 %v49, %v56
  %v59 = vmul.f32 %v50, %v56
  %v60 = vld [vmem:[%s4] sm:$0x1]
  %v62 = vlaneseq
  %v63 = vshrl.u32 %v62, 7
  %v64 = vsub.s32 0, %v63
  %v65 = vrot.slane %v60, %v64
  %v67 = vadd.f32 %v58, %v65
  %v68 = vadd.f32 %v59, %v65
  %v69 = vpack.c.bf16 %v68, %v67
  %v70 = vld [vmem:[%s1] sm:$0xf]
  %v71 = vld [vmem:[%s1 + $0x4] sm:$0xf]
  %v72 = vld [vmem:[%s1 + $0x8] sm:$0xf]
  %v73 = vld [vmem:[%s1 + $0xc] sm:$0xf]
  %v74 = vld [vmem:[%s2] sm:$0x1]
  %v76 = vlaneseq
  %v77 = vshrl.u32 %v76, 7
  %v78 = vsub.s32 0, %v77
  %v79 = vrot.slane %v74, %v78
  %v85 = vunpack.c.l.b16 %v70
  %v86 = vunpack.c.l.b16 %v71
  %v87 = vunpack.c.l.b16 %v72
  %v88 = vunpack.c.l.b16 %v73
  %v89 = vpack.c.b16 %v86, %v85
  %v90 = vpack.c.b16 %v88, %v87
  %v94 = vsel %vm23, %v69, 0
  %96 = vmatprep.subr.bf16.mxu0 0
  %97 = vmatpush1.bf16.msra.mxu0 0
  %98 = vmatprep.subr.bf16.mxu0 0
  %99 = vmatpush1.bf16.msra.mxu0 0
  %100 = vmatprep.subr.bf16.mxu0 0
  %101 = vmatpush1.bf16.msra.mxu0 0
  %102 = vmatprep.subr.bf16.mxu0 0
  %103 = vmatpush1.bf16.msra.mxu0 0
  %104 = vmatprep.subr.bf16.mxu0 0
  %105 = vmatpush1.bf16.msra.mxu0 0
  %106 = vmatprep.subr.bf16.mxu0 0
  %107 = vmatpush1.bf16.msra.mxu0 0
  %108 = vmatprep.subr.bf16.mxu0 0
  %109 = vmatpush1.bf16.msra.mxu0 %v90
  %110 = vmatprep.subr.bf16.mxu0 0
  %111 = vmatpush1.bf16.msra.mxu0 %v89
  %112 = vmatprep.subr.bf16.mxu0 0
  %113 = vmatpush2.bf16.msra.mxu0 0
  %114 = vmatprep.subr.bf16.mxu0 0
  %115 = vmatpush2.bf16.msra.mxu0 0
  %116 = vmatprep.subr.bf16.mxu0 0
  %117 = vmatpush2.bf16.msra.mxu0 0
  %118 = vmatprep.subr.bf16.mxu0 0
  %119 = vmatpush2.bf16.msra.mxu0 0
  %120 = vmatprep.subr.bf16.mxu0 0
  %121 = vmatpush2.bf16.msra.mxu0 0
  %122 = vmatprep.subr.bf16.mxu0 0
  %123 = vmatpush2.bf16.msra.mxu0 0
  %124 = vmatprep.subr.bf16.mxu0 0
  %125 = vmatpush2.bf16.msra.mxu0 0
  %126 = vmatprep.subr.bf16.mxu0 0
  %127 = vmatpush2.bf16.msra.mxu0 0
  %128 = vmatprep.mubr.bf16.mxu0 0
  %129 = vmatmul.mubr.bf16.gmra.mxu0 %v94
  %v130 = vpop.f32.mrf.mxu0
  %v131 = vadd.f32 %v79, %v130
  %v132 = vpop.f32.mrf.mxu0
  %v133 = vpop.f32.mrf.mxu0
  %v134 = vadd.f32 %v79, %v133
  %v135 = vpop.f32.mrf.mxu0
  %136 = vdwg.mxu0
  %v137 = vpack.c.bf16 %v134, %v131
  %v139 = vunpack.c.l.b16 %v137
  %v140 = vunpack.c.h.b16 %v137
  %v141 = vpack.c.b16 %v139, %v139
  %v142 = vpack.c.b16 %v140, %v140
  %145 = vst [vmem:[%s5] sm:$0xf] %v141
  %146 = vst [vmem:[%s5 + $0x4] sm:$0xf] %v142
  // Predicated region
  $region22: #{_lambda_.15} parent=0 // pred_check
    _
  $region23: #{_lambda_.15} parent=0 // pred_check_branch
    %148 = sbr.rel (0) target = $region25
  $region24: #{_lambda_.15} parent=0 // pred_region
    _
  $region25: #{_lambda_.15} parent=0 // pred_fallthru
    _
  // Predicated region
  $region26: #{_lambda_.15} parent=0 // pred_check
    _
  $region27: #{_lambda_.15} parent=0 // pred_check_branch
    %150 = sbr.rel (0) target = $region29
  $region28: #{_lambda_.15} parent=0 // pred_region
    _
  $region29: #{_lambda_.15} parent=0 // pred_fallthru
    _

// kernel: _lambda_.16
$region0: #{_lambda_.16}
  #allocation0 [shape = 'u32[]', space=smem, size = 0x4, offset = 0x4, fixed_abs, tag = 'smem constant byte address 0x4 - core index']
  #allocation1 [shape = 'u32[144,128]{1,0:T(1,128)}', space=vmem, size = 0x12000, scoped, tag = 'internal scratch']
  %s0 = inlined_call_operand.vmem [shape: bf16[2,8,96], index: 0, kind: input, shape index: {}, may-alias: {0,1}]
  %s1 = inlined_call_operand.vmem [shape: bf16[2,8,96], index: 1, kind: input, shape index: {}, may-alias: {0,1}]
  %s2 = inlined_call_operand.vmem [shape: bf16[2,8,32], index: 2, kind: output, shape index: {}]
  %s3 = sld [smem:[#allocation0]]
  $region41: #{_lambda_.16} parent=0
    _
  %s5 = ssub.s32 1, %s3
  %s6 = scalar_select 0, %s5, %s3
  loop: start=0, step=1, limit=4
  $region2: #{_lambda_.16} parent=0 // loop_pre_header
    _
  $region3: #{_lambda_.16} parent=0 // loop_header
    %s8 = sphi 0, %s12
    %p9 = scmp.ge.s32.totalorder %s8, 4
    %s15 = sphi 0, %s27
    %s16 = sphi 0, %s23
    %s17 = sphi 0, %s15
    %s18 = sphi 0, %s16
    %s19 = sphi 0, %s17
    %s20 = sphi 0, %s18
    %s32 = sphi 0, %s34
    %s35 = sphi 0, %s32
    %s36 = sphi 0, %s35
    %s52 = sphi 0, %s36
    %s58 = sphi 0, %s60
    %s61 = sphi 0, %s58
    %s62 = sphi 0, %s61
    %s78 = sphi 0, %s62
    %s86 = sphi 0, %s88
    %s89 = sphi 0, %s86
    %s90 = sphi 0, %s89
    %s106 = sphi 0, %s90
  $region4: #{_lambda_.16} parent=0 // loop_header_branch
    %11 = sbr.rel (%p9) target = $region8
  $region5: #{_lambda_.16} parent=0 // loop_body
    %s13 = ssub.s32 %s8, 1
    %s14 = ssub.s32 %s8, 2
    %s21 = sadd.s32 1, %s16
    %p22 = scmp.ge.s32.totalorder %s21, 1
    %s23 = scalar_select %p22, 0, %s21
    %s24 = sadd.s32 1, %s15
    %s25 = scalar_select %p22, %s24, %s15
    %p26 = scmp.ge.s32.totalorder %s25, 2
    %s27 = scalar_select %p26, 0, %s25
    %s28 = ssub.s32 %s15, %s27
    %s29 = ssub.s32 %s16, %s23
    %s30 = sor.u32 %s28, %s29
    %p31 = scmp.eq.s32.totalorder %s30, 0
    %s33 = sadd.s32 %s32, 1
    %s34 = scalar_select %p31, %s32, %s33
    %p37 = pneg %p31
    %p38 = scmp.eq.s32.totalorder %s8, 1
    %p39 = por %p37, %p38
    %p40 = scmp.ne.s32.totalorder %s32, %s35
    %p41 = scmp.eq.s32.totalorder %s8, 0
    %p42 = por %p40, %p41
    %p43 = scmp.ne.s32.totalorder %s32, %s35
    %p44 = scmp.eq.s32.totalorder %s13, 1
    %p45 = por %p43, %p44
    %p46 = scmp.ne.s32.totalorder %s35, %s36
    %p47 = scmp.eq.s32.totalorder %s13, 0
    %p48 = por %p46, %p47
    %p49 = scmp.ne.s32.totalorder %s35, %s36
    %p50 = scmp.eq.s32.totalorder %s14, 1
    %p51 = por %p49, %p50
    %p53 = scmp.ne.s32.totalorder %s36, %s52
    %p54 = scmp.eq.s32.totalorder %s14, 0
    %p55 = por %p53, %p54
    %s56 = ssub.s32 %s15, %s27
    %p57 = scmp.eq.s32.totalorder %s56, 0
    %s59 = sadd.s32 %s58, 1
    %s60 = scalar_select %p57, %s58, %s59
    %p63 = pneg %p57
    %p64 = scmp.eq.s32.totalorder %s8, 1
    %p65 = por %p63, %p64
    %p66 = scmp.ne.s32.totalorder %s58, %s61
    %p67 = scmp.eq.s32.totalorder %s8, 0
    %p68 = por %p66, %p67
    %p69 = scmp.ne.s32.totalorder %s58, %s61
    %p70 = scmp.eq.s32.totalorder %s13, 1
    %p71 = por %p69, %p70
    %p72 = scmp.ne.s32.totalorder %s61, %s62
    %p73 = scmp.eq.s32.totalorder %s13, 0
    %p74 = por %p72, %p73
    %p75 = scmp.ne.s32.totalorder %s61, %s62
    %p76 = scmp.eq.s32.totalorder %s14, 1
    %p77 = por %p75, %p76
    %p79 = scmp.ne.s32.totalorder %s62, %s78
    %p80 = scmp.eq.s32.totalorder %s14, 0
    %p81 = por %p79, %p80
    %s82 = ssub.s32 %s15, %s27
    %s83 = ssub.s32 %s16, %s23
    %s84 = sor.u32 %s82, %s83
    %p85 = scmp.eq.s32.totalorder %s84, 0
    %s87 = sadd.s32 %s86, 1
    %s88 = scalar_select %p85, %s86, %s87
    %p91 = pneg %p85
    %p92 = scmp.eq.s32.totalorder %s8, 1
    %p93 = por %p91, %p92
    %p94 = scmp.ne.s32.totalorder %s86, %s89
    %p95 = scmp.eq.s32.totalorder %s8, 0
    %p96 = por %p94, %p95
    %p97 = scmp.ne.s32.totalorder %s86, %s89
    %p98 = scmp.eq.s32.totalorder %s13, 1
    %p99 = por %p97, %p98
    %p100 = scmp.ne.s32.totalorder %s89, %s90
    %p101 = scmp.eq.s32.totalorder %s13, 0
    %p102 = por %p100, %p101
    %p103 = scmp.ne.s32.totalorder %s89, %s90
    %p104 = scmp.eq.s32.totalorder %s14, 1
    %p105 = por %p103, %p104
    %p107 = scmp.ne.s32.totalorder %s90, %s106
    %p108 = scmp.eq.s32.totalorder %s14, 0
    %p109 = por %p107, %p108
    %p110 = scmp.le.s32.totalorder 1, %s8
    %p111 = scmp.lt.s32.totalorder %s8, 3
    %p112 = pnand %p110, %p111
    %p113 = pneg %p112
    // Predicated region
    $region9: #{_lambda_.16} parent=5 // pred_check
      _
    $region10: #{_lambda_.16} parent=5 // pred_check_branch
      %115 = sbr.rel (%p112) target = $region12
    $region11: #{_lambda_.16} parent=5 // pred_region
      %s116 = ssub.s32 %s8, 1
    $region12: #{_lambda_.16} parent=5 // pred_fallthru
      _
    %p117 = scmp.lt.s32.totalorder %s8, 2
    // Predicated region
    $region13: #{_lambda_.16} parent=5 // pred_check
      %p118 = pneg %p117
    $region14: #{_lambda_.16} parent=5 // pred_check_branch
      %120 = sbr.rel (%p118) target = $region16
    $region15: #{_lambda_.16} parent=5 // pred_region
      // Predicated region
      $region17: #{_lambda_.16} parent=15 // pred_check
        %p121 = pneg %p42
      $region18: #{_lambda_.16} parent=15 // pred_check_branch
        %123 = sbr.rel (%p121) target = $region20
      $region19: #{_lambda_.16} parent=15 // pred_region
        %p124 = scmp.lt.s32.totalorder %s15, 1
        %s125 = scalar_select %p124, %s15, 1
        %p126 = scmp.lt.s32.totalorder %s16, 0
        %s127 = scalar_select %p126, %s16, 0
        %s128 = sadd.s32 %s127, %s125
        %s129 = smul.addr %s128, 4
        %s130 = scalar_lea.vmem %s0, %s129
      $region20: #{_lambda_.16} parent=15 // pred_fallthru
        _
      // Predicated region
      $region21: #{_lambda_.16} parent=15 // pred_check
        %p131 = pneg %p68
      $region22: #{_lambda_.16} parent=15 // pred_check_branch
        %133 = sbr.rel (%p131) target = $region24
      $region23: #{_lambda_.16} parent=15 // pred_region
        %p134 = scmp.lt.s32.totalorder %s15, 1
        %s135 = scalar_select %p134, %s15, 1
        %s136 = smul.addr %s135, 4
        %s137 = scalar_lea.vmem %s1, %s136
      $region24: #{_lambda_.16} parent=15 // pred_fallthru
        _
    $region16: #{_lambda_.16} parent=5 // pred_fallthru
      _
    %p138 = scmp.le.s32.totalorder 1, %s8
    %p139 = scmp.lt.s32.totalorder %s8, 3
    %p140 = pnand %p138, %p139
    %p141 = pneg %p140
    // Predicated region
    $region25: #{_lambda_.16} parent=5 // pred_check
      _
    $region26: #{_lambda_.16} parent=5 // pred_check_branch
      %143 = sbr.rel (%p140) target = $region28
    $region27: #{_lambda_.16} parent=5 // pred_region
      %s144 = ssub.s32 %s8, 1
      %p145 = scmp.lt.s32.totalorder %s17, 1
      %s146 = scalar_select %p145, %s17, 1
      %p147 = scmp.lt.s32.totalorder %s18, 0
      %s148 = scalar_select %p147, %s18, 0
      %s149 = sadd.s32 %s148, %s146
      %s150 = smul.addr %s149, 4
      %s151 = scalar_lea.vmem %s0, %s150
      %p152 = pneg %p48
      %p153 = pneg %p45
      %p154 = scmp.lt.s32.totalorder %s17, 1
      %s155 = scalar_select %p154, %s17, 1
      %s156 = smul.addr %s155, 4
      %s157 = scalar_lea.vmem %s1, %s156
      %p158 = pneg %p74
      %p159 = pneg %p71
      %p160 = pneg %p102
      %p161 = pneg %p99
      %p162 = scmp.lt.s32.totalorder %s17, 1
      %s163 = scalar_select %p162, %s17, 1
      %p164 = scmp.lt.s32.totalorder %s18, 0
      %s165 = scalar_select %p164, %s18, 0
      %s166 = sadd.s32 %s165, %s163
      %s167 = smul.addr %s166, 4
      %s168 = scalar_lea.vmem %s2, %s167
      %p169 = scmp.lt.s32.totalorder %s17, 1
      %s170 = scalar_select %p169, %s17, 1
      %p171 = scmp.lt.s32.totalorder %s18, 0
      %s172 = scalar_select %p171, %s18, 0
      %s173 = sadd.s32 %s172, %s170
      %s174 = smul.addr %s173, 4
      %s175 = scalar_lea.vmem %s0, %s174
      %p176 = scmp.lt.s32.totalorder %s17, 1
      %s177 = scalar_select %p176, %s17, 1
      %s178 = smul.addr %s177, 4
      %s179 = scalar_lea.vmem %s1, %s178
      %p180 = scmp.lt.s32.totalorder %s17, 1
      %s181 = scalar_select %p180, %s17, 1
      %p182 = scmp.lt.s32.totalorder %s18, 0
      %s183 = scalar_select %p182, %s18, 0
      %s184 = sadd.s32 %s183, %s181
      %s185 = smul.addr %s184, 4
      %s186 = scalar_lea.vmem %s2, %s185
      %v188 = vlaneseq
      %v189 = vand.u32 %v188, 127
      %vm190 = vcmp.lt.s32.totalorder %v189, 5
      %v191 = vld [vmem:[%s175] sm:$0xf]
      %v192 = vunpack.c.l.bf16 %v191
      %v193 = vmul.f32 %v192, 0.25
      %v194 = vpack.c.bf16 %v193, %v193
      %v195 = vld [vmem:[%s179] sm:$0xf]
      %v197 = vunpack.c.l.b16 %v195
      %v198 = vpack.c.b16 %v197, %v197
      %199 = vrot.lane.b32.xlu0 %v198, 96
      %v200 = vpop.permute.xlu0 %199
      %vm201 = vcmask 130048
      %v203 = vsel %vm201, %v194, 0
      %v206 = vsel %vm201, %v200, 0
      %208 = vmatprep.subr.bf16.mxu0 0
      %209 = vmatpush1.bf16.xpose.msra.mxu0 0
      %210 = vmatprep.subr.bf16.mxu0 0
      %211 = vmatpush1.bf16.xpose.msra.mxu0 0
      %212 = vmatprep.subr.bf16.mxu0 0
      %213 = vmatpush1.bf16.xpose.msra.mxu0 0
      %214 = vmatprep.subr.bf16.mxu0 0
      %215 = vmatpush1.bf16.xpose.msra.mxu0 0
      %216 = vmatprep.subr.bf16.mxu0 0
      %217 = vmatpush1.bf16.xpose.msra.mxu0 0
      %218 = vmatprep.subr.bf16.mxu0 0
      %219 = vmatpush1.bf16.xpose.msra.mxu0 0
      %220 = vmatprep.subr.bf16.mxu0 0
      %221 = vmatpush1.bf16.xpose.msra.mxu0 0
      %222 = vmatprep.subr.bf16.mxu0 0
      %223 = vmatpush1.bf16.xpose.msra.mxu0 %v206
      %224 = vmatprep.subr.bf16.mxu0 0
      %225 = vmatpush2.bf16.xpose.msra.mxu0 0
      %226 = vmatprep.subr.bf16.mxu0 0
      %227 = vmatpush2.bf16.xpose.msra.mxu0 0
      %228 = vmatprep.subr.bf16.mxu0 0
      %229 = vmatpush2.bf16.xpose.msra.mxu0 0
      %230 = vmatprep.subr.bf16.mxu0 0
      %231 = vmatpush2.bf16.xpose.msra.mxu0 0
      %232 = vmatprep.subr.bf16.mxu0 0
      %233 = vmatpush2.bf16.xpose.msra.mxu0 0
      %234 = vmatprep.subr.bf16.mxu0 0
      %235 = vmatpush2.bf16.xpose.msra.mxu0 0
      %236 = vmatprep.subr.bf16.mxu0 0
      %237 = vmatpush2.bf16.xpose.msra.mxu0 0
      %238 = vmatprep.subr.bf16.mxu0 0
      %239 = vmatpush2.bf16.xpose.msra.mxu0 0
      %240 = vmatprep.mubr.bf16.mxu0 0
      %241 = vmatmul.mubr.bf16.gmra.mxu0 %v203
      %v242 = vpop.f32.mrf.mxu0
      %v243 = vadd.f32 0.0, %v242
      %v244 = vpop.f32.mrf.mxu0
      %v245 = vpop.f32.mrf.mxu0
      %v246 = vpop.f32.mrf.mxu0
      %247 = vdwg.mxu0
      %v248 = vsel %vm190, %v243, -1e+30
      %vm249 = vcmask 64512
      %v250 = vsel %vm249, %v248, -inf
      %251 = vmax.xlane.f32.xlu0 %v250
      %v252 = vpop.xlane.xlu0 %251
      %v253 = vsub.f32 %v248, %v252
      %v254 = vmul.f32 %v253, 1.442695
      %v255 = vpow.pop %v254
      %v256 = vsel %vm249, %v255, 0.0
      %257 = vadd.xlane.f32.xlu0 %v256
      %v258 = vpop.xlane.xlu0 %257
      %v259 = vpack.c.bf16 %v255, %v255
      %260 = vrot.lane.b32.xlu0 %v198, 64
      %v261 = vpop.permute.xlu0 %260
      %v263 = vsel %vm249, %v259, 0
      %vm265 = vcmask 1043456
      %v267 = vsel %vm265, %v261, 0
      %269 = vmatprep.subr.bf16.mxu0 0
      %270 = vmatpush1.bf16.msra.mxu0 0
      %271 = vmatprep.subr.bf16.mxu0 0
      %272 = vmatpush1.bf16.msra.mxu0 0
      %273 = vmatprep.subr.bf16.mxu0 0
      %274 = vmatpush1.bf16.msra.mxu0 0
      %275 = vmatprep.subr.bf16.mxu0 0
      %276 = vmatpush1.bf16.msra.mxu0 0
      %277 = vmatprep.subr.bf16.mxu0 0
      %278 = vmatpush1.bf16.msra.mxu0 0
      %279 = vmatprep.subr.bf16.mxu0 0
      %280 = vmatpush1.bf16.msra.mxu0 0
      %281 = vmatprep.subr.bf16.mxu0 0
      %282 = vmatpush1.bf16.msra.mxu0 0
      %283 = vmatprep.subr.bf16.mxu0 0
      %284 = vmatpush1.bf16.msra.mxu0 %v267
      %285 = vmatprep.subr.bf16.mxu0 0
      %286 = vmatpush2.bf16.msra.mxu0 0
      %287 = vmatprep.subr.bf16.mxu0 0
      %288 = vmatpush2.bf16.msra.mxu0 0
      %289 = vmatprep.subr.bf16.mxu0 0
      %290 = vmatpush2.bf16.msra.mxu0 0
      %291 = vmatprep.subr.bf16.mxu0 0
      %292 = vmatpush2.bf16.msra.mxu0 0
      %293 = vmatprep.subr.bf16.mxu0 0
      %294 = vmatpush2.bf16.msra.mxu0 0
      %295 = vmatprep.subr.bf16.mxu0 0
      %296 = vmatpush2.bf16.msra.mxu0 0
      %297 = vmatprep.subr.bf16.mxu0 0
      %298 = vmatpush2.bf16.msra.mxu0 0
      %299 = vmatprep.subr.bf16.mxu0 0
      %300 = vmatpush2.bf16.msra.mxu0 0
      %301 = vmatprep.mubr.bf16.mxu0 0
      %302 = vmatmul.mubr.bf16.gmra.mxu0 %v263
      %v303 = vpop.f32.mrf.mxu0
      %v304 = vadd.f32 0.0, %v303
      %v305 = vpop.f32.mrf.mxu0
      %v306 = vpop.f32.mrf.mxu0
      %v307 = vpop.f32.mrf.mxu0
      %308 = vdwg.mxu0
      %v309 = vrcp.pop %v258
      %v310 = vmul.f32 %v304, %v309
      %312 = vrot.lane.b32.xlu0 %v194, 112
      %v313 = vpop.permute.xlu0 %312
      %314 = vrot.lane.b32.xlu0 %v198, 80
      %v315 = vpop.permute.xlu0 %314
      %v317 = vsel %vm201, %v313, 0
      %v320 = vsel %vm201, %v315, 0
      %322 = vmatprep.subr.bf16.mxu0 0
      %323 = vmatpush1.bf16.xpose.msra.mxu0 0
      %324 = vmatprep.subr.bf16.mxu0 0
      %325 = vmatpush1.bf16.xpose.msra.mxu0 0
      %326 = vmatprep.subr.bf16.mxu0 0
      %327 = vmatpush1.bf16.xpose.msra.mxu0 0
      %328 = vmatprep.subr.bf16.mxu0 0
      %329 = vmatpush1.bf16.xpose.msra.mxu0 0
      %330 = vmatprep.subr.bf16.mxu0 0
      %331 = vmatpush1.bf16.xpose.msra.mxu0 0
      %332 = vmatprep.subr.bf16.mxu0 0
      %333 = vmatpush1.bf16.xpose.msra.mxu0 0
      %334 = vmatprep.subr.bf16.mxu0 0
      %335 = vmatpush1.bf16.xpose.msra.mxu0 0
      %336 = vmatprep.subr.bf16.mxu0 0
      %337 = vmatpush1.bf16.xpose.msra.mxu0 %v320
      %338 = vmatprep.subr.bf16.mxu0 0
      %339 = vmatpush2.bf16.xpose.msra.mxu0 0
      %340 = vmatprep.subr.bf16.mxu0 0
      %341 = vmatpush2.bf16.xpose.msra.mxu0 0
      %342 = vmatprep.subr.bf16.mxu0 0
      %343 = vmatpush2.bf16.xpose.msra.mxu0 0
      %344 = vmatprep.subr.bf16.mxu0 0
      %345 = vmatpush2.bf16.xpose.msra.mxu0 0
      %346 = vmatprep.subr.bf16.mxu0 0
      %347 = vmatpush2.bf16.xpose.msra.mxu0 0
      %348 = vmatprep.subr.bf16.mxu0 0
      %349 = vmatpush2.bf16.xpose.msra.mxu0 0
      %350 = vmatprep.subr.bf16.mxu0 0
      %351 = vmatpush2.bf16.xpose.msra.mxu0 0
      %352 = vmatprep.subr.bf16.mxu0 0
      %353 = vmatpush2.bf16.xpose.msra.mxu0 0
      %354 = vmatprep.mubr.bf16.mxu0 0
      %355 = vmatmul.mubr.bf16.gmra.mxu0 %v317
      %v356 = vpop.f32.mrf.mxu0
      %v357 = vadd.f32 0.0, %v356
      %v358 = vpop.f32.mrf.mxu0
      %v359 = vpop.f32.mrf.mxu0
      %v360 = vpop.f32.mrf.mxu0
      %361 = vdwg.mxu0
      %v362 = vsel %vm190, %v357, -1e+30
      %v363 = vsel %vm249, %v362, -inf
      %364 = vmax.xlane.f32.xlu0 %v363
      %v365 = vpop.xlane.xlu0 %364
      %v366 = vsub.f32 %v362, %v365
      %v367 = vmul.f32 %v366, 1.442695
      %v368 = vpow.pop %v367
      %v369 = vsel %vm249, %v368, 0.0
      %370 = vadd.xlane.f32.xlu0 %v369
      %v371 = vpop.xlane.xlu0 %370
      %v372 = vpack.c.bf16 %v368, %v368
      %373 = vrot.lane.b32.xlu0 %v198, 48
      %v374 = vpop.permute.xlu0 %373
      %v376 = vsel %vm249, %v372, 0
      %v379 = vsel %vm265, %v374, 0
      %381 = vmatprep.subr.bf16.mxu0 0
      %382 = vmatpush1.bf16.msra.mxu0 0
      %383 = vmatprep.subr.bf16.mxu0 0
      %384 = vmatpush1.bf16.msra.mxu0 0
      %385 = vmatprep.subr.bf16.mxu0 0
      %386 = vmatpush1.bf16.msra.mxu0 0
      %387 = vmatprep.subr.bf16.mxu0 0
      %388 = vmatpush1.bf16.msra.mxu0 0
      %389 = vmatprep.subr.bf16.mxu0 0
      %390 = vmatpush1.bf16.msra.mxu0 0
      %391 = vmatprep.subr.bf16.mxu0 0
      %392 = vmatpush1.bf16.msra.mxu0 0
      %393 = vmatprep.subr.bf16.mxu0 0
      %394 = vmatpush1.bf16.msra.mxu0 0
      %395 = vmatprep.subr.bf16.mxu0 0
      %396 = vmatpush1.bf16.msra.mxu0 %v379
      %397 = vmatprep.subr.bf16.mxu0 0
      %398 = vmatpush2.bf16.msra.mxu0 0
      %399 = vmatprep.subr.bf16.mxu0 0
      %400 = vmatpush2.bf16.msra.mxu0 0
      %401 = vmatprep.subr.bf16.mxu0 0
      %402 = vmatpush2.bf16.msra.mxu0 0
      %403 = vmatprep.subr.bf16.mxu0 0
      %404 = vmatpush2.bf16.msra.mxu0 0
      %405 = vmatprep.subr.bf16.mxu0 0
      %406 = vmatpush2.bf16.msra.mxu0 0
      %407 = vmatprep.subr.bf16.mxu0 0
      %408 = vmatpush2.bf16.msra.mxu0 0
      %409 = vmatprep.subr.bf16.mxu0 0
      %410 = vmatpush2.bf16.msra.mxu0 0
      %411 = vmatprep.subr.bf16.mxu0 0
      %412 = vmatpush2.bf16.msra.mxu0 0
      %413 = vmatprep.mubr.bf16.mxu0 0
      %414 = vmatmul.mubr.bf16.gmra.mxu0 %v376
      %v415 = vpop.f32.mrf.mxu0
      %v416 = vadd.f32 0.0, %v415
      %v417 = vpop.f32.mrf.mxu0
      %v418 = vpop.f32.mrf.mxu0
      %v419 = vpop.f32.mrf.mxu0
      %420 = vdwg.mxu0
      %v421 = vrcp.pop %v371
      %v422 = vmul.f32 %v416, %v421
      %424 = vrot.lane.b32.xlu0 %v422, 16
      %v425 = vpop.permute.xlu0 %424
      %v427 = vsel %vm201, %v310, %v425
      %v428 = vpack.c.bf16 %v427, %v427
      %vm429 = vcmask 257024
      %430 = vst.msk [vmem:[%s186] sm:$0xf] %vm429, %v428
      %p431 = scmp.lt.s32.totalorder %s17, 1
      %s432 = scalar_select %p431, %s17, 1
      %p433 = scmp.lt.s32.totalorder %s18, 0
      %s434 = scalar_select %p433, %s18, 0
      %s435 = sadd.s32 %s434, %s432
      %s436 = smul.addr %s435, 4
      %s437 = scalar_lea.vmem %s2, %s436
      // Predicated region
      $region29: #{_lambda_.16} parent=27 // pred_check
        %p438 = pneg %p99
      $region30: #{_lambda_.16} parent=27 // pred_check_branch
        %440 = sbr.rel (%p438) target = $region32
      $region31: #{_lambda_.16} parent=27 // pred_region
        _
      $region32: #{_lambda_.16} parent=27 // pred_fallthru
        _
    $region28: #{_lambda_.16} parent=5 // pred_fallthru
      _
    %p441 = scmp.le.s32.totalorder 2, %s8
    // Predicated region
    $region33: #{_lambda_.16} parent=5 // pred_check
      %p442 = pneg %p441
    $region34: #{_lambda_.16} parent=5 // pred_check_branch
      %444 = sbr.rel (%p442) target = $region36
    $region35: #{_lambda_.16} parent=5 // pred_region
      %s445 = ssub.s32 %s8, 2
      // Predicated region
      $region37: #{_lambda_.16} parent=35 // pred_check
        %p446 = pneg %p105
      $region38: #{_lambda_.16} parent=35 // pred_check_branch
        %448 = sbr.rel (%p446) target = $region40
      $region39: #{_lambda_.16} parent=35 // pred_region
        %p449 = scmp.lt.s32.totalorder %s19, 1
        %s450 = scalar_select %p449, %s19, 1
        %p451 = scmp.lt.s32.totalorder %s20, 0
        %s452 = scalar_select %p451, %s20, 0
        %s453 = sadd.s32 %s452, %s450
        %s454 = smul.addr %s453, 4
        %s455 = scalar_lea.vmem %s2, %s454
      $region40: #{_lambda_.16} parent=35 // pred_fallthru
        _
    $region36: #{_lambda_.16} parent=5 // pred_fallthru
      _
  $region6: #{_lambda_.16} parent=0 // loop_footer
    %s12 = sadd.s32 1, %s8
  $region7: #{_lambda_.16} parent=0 // loop_footer_branch
    %7 = sbr.rel target = $region3
  $region8: #{_lambda_.16} parent=0 // loop_exit
    _

// kernel: _lambda_.18
$region0: #{_lambda_.18}
  #allocation0 [shape = 'u32[]', space=smem, size = 0x4, offset = 0x4, fixed_abs, tag = 'smem constant byte address 0x4 - core index']
  #allocation1 [shape = 'u32[144,128]{1,0:T(1,128)}', space=vmem, size = 0x12000, scoped, tag = 'internal scratch']
  %s0 = inlined_call_operand.vmem [shape: f32[16,32], index: 0, kind: input, shape index: {}]
  %s1 = inlined_call_operand.vmem [shape: bf16[32,128], index: 1, kind: input, shape index: {}]
  %s2 = inlined_call_operand.vmem [shape: f32[1,128], index: 2, kind: input, shape index: {}]
  %s3 = inlined_call_operand.vmem [shape: f32[1,32], index: 3, kind: input, shape index: {}]
  %s4 = inlined_call_operand.vmem [shape: f32[1,32], index: 4, kind: input, shape index: {}]
  %s5 = inlined_call_operand.vmem [shape: bf16[16,128], index: 5, kind: output, shape index: {}]
  %s6 = sld [smem:[#allocation0]]
  $region30: #{_lambda_.18} parent=0
    _
  %s8 = ssub.s32 1, %s6
  %s9 = scalar_select 0, %s8, %s6
  // Predicated region
  $region2: #{_lambda_.18} parent=0 // pred_check
    _
  $region3: #{_lambda_.18} parent=0 // pred_check_branch
    %11 = sbr.rel (0) target = $region5
  $region4: #{_lambda_.18} parent=0 // pred_region
    _
  $region5: #{_lambda_.18} parent=0 // pred_fallthru
    _
  // Predicated region
  $region6: #{_lambda_.18} parent=0 // pred_check
    _
  $region7: #{_lambda_.18} parent=0 // pred_check_branch
    %13 = sbr.rel (0) target = $region9
  $region8: #{_lambda_.18} parent=0 // pred_region
    _
  $region9: #{_lambda_.18} parent=0 // pred_fallthru
    _
  // Predicated region
  $region10: #{_lambda_.18} parent=0 // pred_check
    _
  $region11: #{_lambda_.18} parent=0 // pred_check_branch
    %15 = sbr.rel (0) target = $region13
  $region12: #{_lambda_.18} parent=0 // pred_region
    _
  $region13: #{_lambda_.18} parent=0 // pred_fallthru
    _
  // Predicated region
  $region14: #{_lambda_.18} parent=0 // pred_check
    _
  $region15: #{_lambda_.18} parent=0 // pred_check_branch
    %17 = sbr.rel (0) target = $region17
  $region16: #{_lambda_.18} parent=0 // pred_region
    _
  $region17: #{_lambda_.18} parent=0 // pred_fallthru
    _
  // Predicated region
  $region18: #{_lambda_.18} parent=0 // pred_check
    _
  $region19: #{_lambda_.18} parent=0 // pred_check_branch
    %19 = sbr.rel (0) target = $region21
  $region20: #{_lambda_.18} parent=0 // pred_region
    _
  $region21: #{_lambda_.18} parent=0 // pred_fallthru
    _
  %v21 = vld [vmem:[%s0] sm:$0xff]
  %v22 = vld [vmem:[%s0 + $0x8] sm:$0xff]
  %vm23 = vcmask 261120
  %v24 = vsel %vm23, %v21, 0.0
  %25 = vadd.xlane.f32.xlu0 %v24
  %v26 = vpop.xlane.xlu0 %25
  %v27 = vsel %vm23, %v22, 0.0
  %28 = vadd.xlane.f32.xlu0 %v27
  %v29 = vpop.xlane.xlu0 %28
  %v30 = vrcp.pop 32.0
  %v31 = vmul.f32 %v26, %v30
  %v32 = vmul.f32 %v29, %v30
  %v33 = vsub.f32 %v21, %v31
  %v34 = vsub.f32 %v22, %v32
  %v35 = vmul.f32 %v33, %v33
  %v36 = vmul.f32 %v34, %v34
  %v37 = vsel %vm23, %v35, 0.0
  %38 = vadd.xlane.f32.xlu0 %v37
  %v39 = vpop.xlane.xlu0 %38
  %v40 = vsel %vm23, %v36, 0.0
  %41 = vadd.xlane.f32.xlu0 %v40
  %v42 = vpop.xlane.xlu0 %41
  %v43 = vmul.f32 %v39, %v30
  %v44 = vmul.f32 %v42, %v30
  %v45 = vadd.f32 %v43, 1e-05
  %v46 = vadd.f32 %v44, 1e-05
  %v47 = vrsqrt.pop %v45
  %v48 = vrsqrt.pop %v46
  %v49 = vmul.f32 %v33, %v47
  %v50 = vmul.f32 %v34, %v48
  %v51 = vld [vmem:[%s3] sm:$0x1]
  %v53 = vlaneseq
  %v54 = vshrl.u32 %v53, 7
  %v55 = vsub.s32 0, %v54
  %v56 = vrot.slane %v51, %v55
  %v58 = vmul.f32 %v49, %v56
  %v59 = vmul.f32 %v50, %v56
  %v60 = vld [vmem:[%s4] sm:$0x1]
  %v62 = vlaneseq
  %v63 = vshrl.u32 %v62, 7
  %v64 = vsub.s32 0, %v63
  %v65 = vrot.slane %v60, %v64
  %v67 = vadd.f32 %v58, %v65
  %v68 = vadd.f32 %v59, %v65
  %v69 = vpack.c.bf16 %v68, %v67
  %v70 = vld [vmem:[%s1] sm:$0xf]
  %v71 = vld [vmem:[%s1 + $0x4] sm:$0xf]
  %v72 = vld [vmem:[%s1 + $0x8] sm:$0xf]
  %v73 = vld [vmem:[%s1 + $0xc] sm:$0xf]
  %v74 = vld [vmem:[%s2] sm:$0x1]
  %v76 = vlaneseq
  %v77 = vshrl.u32 %v76, 7
  %v78 = vsub.s32 0, %v77
  %v79 = vrot.slane %v74, %v78
  %v85 = vunpack.c.l.b16 %v70
  %v86 = vunpack.c.l.b16 %v71
  %v87 = vunpack.c.l.b16 %v72
  %v88 = vunpack.c.l.b16 %v73
  %v89 = vpack.c.b16 %v86, %v85
  %v90 = vpack.c.b16 %v88, %v87
  %v94 = vsel %vm23, %v69, 0
  %96 = vmatprep.subr.bf16.mxu0 0
  %97 = vmatpush1.bf16.msra.mxu0 0
  %98 = vmatprep.subr.bf16.mxu0 0
  %99 = vmatpush1.bf16.msra.mxu0 0
  %100 = vmatprep.subr.bf16.mxu0 0
  %101 = vmatpush1.bf16.msra.mxu0 0
  %102 = vmatprep.subr.bf16.mxu0 0
  %103 = vmatpush1.bf16.msra.mxu0 0
  %104 = vmatprep.subr.bf16.mxu0 0
  %105 = vmatpush1.bf16.msra.mxu0 0
  %106 = vmatprep.subr.bf16.mxu0 0
  %107 = vmatpush1.bf16.msra.mxu0 0
  %108 = vmatprep.subr.bf16.mxu0 0
  %109 = vmatpush1.bf16.msra.mxu0 %v90
  %110 = vmatprep.subr.bf16.mxu0 0
  %111 = vmatpush1.bf16.msra.mxu0 %v89
  %112 = vmatprep.subr.bf16.mxu0 0
  %113 = vmatpush2.bf16.msra.mxu0 0
  %114 = vmatprep.subr.bf16.mxu0 0
  %115 = vmatpush2.bf16.msra.mxu0 0
  %116 = vmatprep.subr.bf16.mxu0 0
  %117 = vmatpush2.bf16.msra.mxu0 0
  %118 = vmatprep.subr.bf16.mxu0 0
  %119 = vmatpush2.bf16.msra.mxu0 0
  %120 = vmatprep.subr.bf16.mxu0 0
  %121 = vmatpush2.bf16.msra.mxu0 0
  %122 = vmatprep.subr.bf16.mxu0 0
  %123 = vmatpush2.bf16.msra.mxu0 0
  %124 = vmatprep.subr.bf16.mxu0 0
  %125 = vmatpush2.bf16.msra.mxu0 0
  %126 = vmatprep.subr.bf16.mxu0 0
  %127 = vmatpush2.bf16.msra.mxu0 0
  %128 = vmatprep.mubr.bf16.mxu0 0
  %129 = vmatmul.mubr.bf16.gmra.mxu0 %v94
  %v130 = vpop.f32.mrf.mxu0
  %v131 = vadd.f32 %v79, %v130
  %v132 = vpop.f32.mrf.mxu0
  %v133 = vpop.f32.mrf.mxu0
  %v134 = vadd.f32 %v79, %v133
  %v135 = vpop.f32.mrf.mxu0
  %136 = vdwg.mxu0
  %v137 = vmul.f32 %v131, 0.5
  %v138 = vmul.f32 %v134, 0.5
  %v139 = vmul.f32 %v131, 0.044715
  %v140 = vmul.f32 %v134, 0.044715
  %v141 = vmul.f32 %v139, %v131
  %v142 = vmul.f32 %v140, %v134
  %v143 = vmul.f32 %v141, %v131
  %v144 = vmul.f32 %v142, %v134
  %v145 = vadd.f32 %v131, %v143
  %v146 = vadd.f32 %v134, %v144
  %v147 = vmul.f32 %v145, 0.7978846
  %v148 = vmul.f32 %v146, 0.7978846
  %v149 = vtanh.pop %v147
  %v150 = vtanh.pop %v148
  %v151 = vadd.f32 %v149, 1.0
  %v152 = vadd.f32 %v150, 1.0
  %v153 = vmul.f32 %v137, %v151
  %v154 = vmul.f32 %v138, %v152
  %v155 = vpack.c.bf16 %v154, %v153
  %v157 = vunpack.c.l.b16 %v155
  %v158 = vunpack.c.h.b16 %v155
  %v159 = vpack.c.b16 %v157, %v157
  %v160 = vpack.c.b16 %v158, %v158
  %163 = vst [vmem:[%s5] sm:$0xf] %v159
  %164 = vst [vmem:[%s5 + $0x4] sm:$0xf] %v160
  // Predicated region
  $region22: #{_lambda_.18} parent=0 // pred_check
    _
  $region23: #{_lambda_.18} parent=0 // pred_check_branch
    %166 = sbr.rel (0) target = $region25
  $region24: #{_lambda_.18} parent=0 // pred_region
    _
  $region25: #{_lambda_.18} parent=0 // pred_fallthru
    _
  // Predicated region
  $region26: #{_lambda_.18} parent=0 // pred_check
    _
  $region27: #{_lambda_.18} parent=0 // pred_check_branch
    %168 = sbr.rel (0) target = $region29
  $region28: #{_lambda_.18} parent=0 // pred_region
    _
  $region29: #{_lambda_.18} parent=0 // pred_fallthru
    _

// kernel: _lambda_.17
$region0: #{_lambda_.17}
  #allocation0 [shape = 'u32[]', space=smem, size = 0x4, offset = 0x4, fixed_abs, tag = 'smem constant byte address 0x4 - core index']
  #allocation1 [shape = 'u32[144,128]{1,0:T(1,128)}', space=vmem, size = 0x12000, scoped, tag = 'internal scratch']
  %s0 = inlined_call_operand.vmem [shape: bf16[16,32], index: 0, kind: input, shape index: {}]
  %s1 = inlined_call_operand.vmem [shape: bf16[32,128], index: 1, kind: input, shape index: {}]
  %s2 = inlined_call_operand.vmem [shape: f32[1,128], index: 2, kind: input, shape index: {}]
  %s3 = inlined_call_operand.vmem [shape: f32[16,128], index: 3, kind: input, shape index: {}]
  %s4 = inlined_call_operand.vmem [shape: f32[16,128], index: 4, kind: output, shape index: {}]
  %s5 = sld [smem:[#allocation0]]
  $region26: #{_lambda_.17} parent=0
    _
  %s7 = ssub.s32 1, %s5
  %s8 = scalar_select 0, %s7, %s5
  // Predicated region
  $region2: #{_lambda_.17} parent=0 // pred_check
    _
  $region3: #{_lambda_.17} parent=0 // pred_check_branch
    %10 = sbr.rel (0) target = $region5
  $region4: #{_lambda_.17} parent=0 // pred_region
    _
  $region5: #{_lambda_.17} parent=0 // pred_fallthru
    _
  // Predicated region
  $region6: #{_lambda_.17} parent=0 // pred_check
    _
  $region7: #{_lambda_.17} parent=0 // pred_check_branch
    %12 = sbr.rel (0) target = $region9
  $region8: #{_lambda_.17} parent=0 // pred_region
    _
  $region9: #{_lambda_.17} parent=0 // pred_fallthru
    _
  // Predicated region
  $region10: #{_lambda_.17} parent=0 // pred_check
    _
  $region11: #{_lambda_.17} parent=0 // pred_check_branch
    %14 = sbr.rel (0) target = $region13
  $region12: #{_lambda_.17} parent=0 // pred_region
    _
  $region13: #{_lambda_.17} parent=0 // pred_fallthru
    _
  // Predicated region
  $region14: #{_lambda_.17} parent=0 // pred_check
    _
  $region15: #{_lambda_.17} parent=0 // pred_check_branch
    %16 = sbr.rel (0) target = $region17
  $region16: #{_lambda_.17} parent=0 // pred_region
    _
  $region17: #{_lambda_.17} parent=0 // pred_fallthru
    _
  %v18 = vld [vmem:[%s0] sm:$0xf]
  %v19 = vld [vmem:[%s0 + $0x4] sm:$0xf]
  %v20 = vld [vmem:[%s1] sm:$0xf]
  %v21 = vld [vmem:[%s1 + $0x4] sm:$0xf]
  %v22 = vld [vmem:[%s1 + $0x8] sm:$0xf]
  %v23 = vld [vmem:[%s1 + $0xc] sm:$0xf]
  %v24 = vld [vmem:[%s2] sm:$0x1]
  %v26 = vlaneseq
  %v27 = vshrl.u32 %v26, 7
  %v28 = vsub.s32 0, %v27
  %v29 = vrot.slane %v24, %v28
  %v33 = vunpack.c.l.b16 %v18
  %v34 = vunpack.c.l.b16 %v19
  %v35 = vpack.c.b16 %v34, %v33
  %v40 = vunpack.c.l.b16 %v20
  %v41 = vunpack.c.l.b16 %v21
  %v42 = vunpack.c.l.b16 %v22
  %v43 = vunpack.c.l.b16 %v23
  %v44 = vpack.c.b16 %v41, %v40
  %v45 = vpack.c.b16 %v43, %v42
  %vm48 = vcmask 261120
  %v50 = vsel %vm48, %v35, 0
  %52 = vmatprep.subr.bf16.mxu0 0
  %53 = vmatpush1.bf16.msra.mxu0 0
  %54 = vmatprep.subr.bf16.mxu0 0
  %55 = vmatpush1.bf16.msra.mxu0 0
  %56 = vmatprep.subr.bf16.mxu0 0
  %57 = vmatpush1.bf16.msra.mxu0 0
  %58 = vmatprep.subr.bf16.mxu0 0
  %59 = vmatpush1.bf16.msra.mxu0 0
  %60 = vmatprep.subr.bf16.mxu0 0
  %61 = vmatpush1.bf16.msra.mxu0 0
  %62 = vmatprep.subr.bf16.mxu0 0
  %63 = vmatpush1.bf16.msra.mxu0 0
  %64 = vmatprep.subr.bf16.mxu0 0
  %65 = vmatpush1.bf16.msra.mxu0 %v45
  %66 = vmatprep.subr.bf16.mxu0 0
  %67 = vmatpush1.bf16.msra.mxu0 %v44
  %68 = vmatprep.subr.bf16.mxu0 0
  %69 = vmatpush2.bf16.msra.mxu0 0
  %70 = vmatprep.subr.bf16.mxu0 0
  %71 = vmatpush2.bf16.msra.mxu0 0
  %72 = vmatprep.subr.bf16.mxu0 0
  %73 = vmatpush2.bf16.msra.mxu0 0
  %74 = vmatprep.subr.bf16.mxu0 0
  %75 = vmatpush2.bf16.msra.mxu0 0
  %76 = vmatprep.subr.bf16.mxu0 0
  %77 = vmatpush2.bf16.msra.mxu0 0
  %78 = vmatprep.subr.bf16.mxu0 0
  %79 = vmatpush2.bf16.msra.mxu0 0
  %80 = vmatprep.subr.bf16.mxu0 0
  %81 = vmatpush2.bf16.msra.mxu0 0
  %82 = vmatprep.subr.bf16.mxu0 0
  %83 = vmatpush2.bf16.msra.mxu0 0
  %84 = vmatprep.mubr.bf16.mxu0 0
  %85 = vmatmul.mubr.bf16.gmra.mxu0 %v50
  %v86 = vpop.f32.mrf.mxu0
  %v87 = vadd.f32 %v29, %v86
  %v88 = vpop.f32.mrf.mxu0
  %v89 = vpop.f32.mrf.mxu0
  %v90 = vadd.f32 %v29, %v89
  %v91 = vpop.f32.mrf.mxu0
  %92 = vdwg.mxu0
  %v93 = vld [vmem:[%s3] sm:$0xff]
  %v94 = vld [vmem:[%s3 + $0x8] sm:$0xff]
  %v95 = vadd.f32 %v87, %v93
  %v96 = vadd.f32 %v90, %v94
  %97 = vst [vmem:[%s4] sm:$0xff] %v95
  %98 = vst [vmem:[%s4 + $0x8] sm:$0xff] %v96
  // Predicated region
  $region18: #{_lambda_.17} parent=0 // pred_check
    _
  $region19: #{_lambda_.17} parent=0 // pred_check_branch
    %100 = sbr.rel (0) target = $region21
  $region20: #{_lambda_.17} parent=0 // pred_region
    _
  $region21: #{_lambda_.17} parent=0 // pred_fallthru
    _
  // Predicated region
  $region22: #{_lambda_.17} parent=0 // pred_check
    _
  $region23: #{_lambda_.17} parent=0 // pred_check_branch
    %102 = sbr.rel (0) target = $region25
  $region24: #{_lambda_.17} parent=0 // pred_region
    _
  $region25: #{_lambda_.17} parent=0 // pred_fallthru
    _

// kernel: _lambda_.19
$region0: #{_lambda_.19}
  #allocation0 [shape = 'u32[]', space=smem, size = 0x4, offset = 0x4, fixed_abs, tag = 'smem constant byte address 0x4 - core index']
  #allocation1 [shape = 'u32[144,128]{1,0:T(1,128)}', space=vmem, size = 0x12000, scoped, tag = 'internal scratch']
  %s0 = inlined_call_operand.vmem [shape: bf16[16,128], index: 0, kind: input, shape index: {}]
  %s1 = inlined_call_operand.vmem [shape: bf16[128,128], index: 1, kind: input, shape index: {}]
  %s2 = inlined_call_operand.vmem [shape: f32[1,128], index: 2, kind: input, shape index: {}]
  %s3 = inlined_call_operand.vmem [shape: f32[16,128], index: 3, kind: input, shape index: {}]
  %s4 = inlined_call_operand.vmem [shape: f32[16,128], index: 4, kind: output, shape index: {}]
  %s5 = sld [smem:[#allocation0]]
  $region26: #{_lambda_.19} parent=0
    _
  %s7 = ssub.s32 1, %s5
  %s8 = scalar_select 0, %s7, %s5
  // Predicated region
  $region2: #{_lambda_.19} parent=0 // pred_check
    _
  $region3: #{_lambda_.19} parent=0 // pred_check_branch
    %10 = sbr.rel (0) target = $region5
  $region4: #{_lambda_.19} parent=0 // pred_region
    _
  $region5: #{_lambda_.19} parent=0 // pred_fallthru
    _
  // Predicated region
  $region6: #{_lambda_.19} parent=0 // pred_check
    _
  $region7: #{_lambda_.19} parent=0 // pred_check_branch
    %12 = sbr.rel (0) target = $region9
  $region8: #{_lambda_.19} parent=0 // pred_region
    _
  $region9: #{_lambda_.19} parent=0 // pred_fallthru
    _
  // Predicated region
  $region10: #{_lambda_.19} parent=0 // pred_check
    _
  $region11: #{_lambda_.19} parent=0 // pred_check_branch
    %14 = sbr.rel (0) target = $region13
  $region12: #{_lambda_.19} parent=0 // pred_region
    _
  $region13: #{_lambda_.19} parent=0 // pred_fallthru
    _
  // Predicated region
  $region14: #{_lambda_.19} parent=0 // pred_check
    _
  $region15: #{_lambda_.19} parent=0 // pred_check_branch
    %16 = sbr.rel (0) target = $region17
  $region16: #{_lambda_.19} parent=0 // pred_region
    _
  $region17: #{_lambda_.19} parent=0 // pred_fallthru
    _
  %v18 = vld [vmem:[%s0] sm:$0xf]
  %v19 = vld [vmem:[%s0 + $0x4] sm:$0xf]
  %v20 = vld [vmem:[%s1] sm:$0xf]
  %v21 = vld [vmem:[%s1 + $0x4] sm:$0xf]
  %v22 = vld [vmem:[%s1 + $0x8] sm:$0xf]
  %v23 = vld [vmem:[%s1 + $0xc] sm:$0xf]
  %v24 = vld [vmem:[%s1 + $0x10] sm:$0xf]
  %v25 = vld [vmem:[%s1 + $0x14] sm:$0xf]
  %v26 = vld [vmem:[%s1 + $0x18] sm:$0xf]
  %v27 = vld [vmem:[%s1 + $0x1c] sm:$0xf]
  %v28 = vld [vmem:[%s1 + $0x20] sm:$0xf]
  %v29 = vld [vmem:[%s1 + $0x24] sm:$0xf]
  %v30 = vld [vmem:[%s1 + $0x28] sm:$0xf]
  %v31 = vld [vmem:[%s1 + $0x2c] sm:$0xf]
  %v32 = vld [vmem:[%s1 + $0x30] sm:$0xf]
  %v33 = vld [vmem:[%s1 + $0x34] sm:$0xf]
  %v34 = vld [vmem:[%s1 + $0x38] sm:$0xf]
  %v35 = vld [vmem:[%s1 + $0x3c] sm:$0xf]
  %v36 = vld [vmem:[%s2] sm:$0x1]
  %v38 = vlaneseq
  %v39 = vshrl.u32 %v38, 7
  %v40 = vsub.s32 0, %v39
  %v41 = vrot.slane %v36, %v40
  %v45 = vunpack.c.l.b16 %v18
  %v46 = vunpack.c.l.b16 %v19
  %v47 = vpack.c.b16 %v46, %v45
  %v65 = vunpack.c.l.b16 %v20
  %v66 = vunpack.c.l.b16 %v21
  %v67 = vunpack.c.l.b16 %v22
  %v68 = vunpack.c.l.b16 %v23
  %v69 = vunpack.c.l.b16 %v24
  %v70 = vunpack.c.l.b16 %v25
  %v71 = vunpack.c.l.b16 %v26
  %v72 = vunpack.c.l.b16 %v27
  %v73 = vunpack.c.l.b16 %v28
  %v74 = vunpack.c.l.b16 %v29
  %v75 = vunpack.c.l.b16 %v30
  %v76 = vunpack.c.l.b16 %v31
  %v77 = vunpack.c.l.b16 %v32
  %v78 = vunpack.c.l.b16 %v33
  %v79 = vunpack.c.l.b16 %v34
  %v80 = vunpack.c.l.b16 %v35
  %v81 = vpack.c.b16 %v66, %v65
  %v82 = vpack.c.b16 %v68, %v67
  %v83 = vpack.c.b16 %v70, %v69
  %v84 = vpack.c.b16 %v72, %v71
  %v85 = vpack.c.b16 %v74, %v73
  %v86 = vpack.c.b16 %v76, %v75
  %v87 = vpack.c.b16 %v78, %v77
  %v88 = vpack.c.b16 %v80, %v79
  %97 = vmatprep.subr.bf16.mxu0 0
  %98 = vmatpush1.bf16.msra.mxu0 %v88
  %99 = vmatprep.subr.bf16.mxu0 0
  %100 = vmatpush1.bf16.msra.mxu0 %v87
  %101 = vmatprep.subr.bf16.mxu0 0
  %102 = vmatpush1.bf16.msra.mxu0 %v86
  %103 = vmatprep.subr.bf16.mxu0 0
  %104 = vmatpush1.bf16.msra.mxu0 %v85
  %105 = vmatprep.subr.bf16.mxu0 0
  %106 = vmatpush1.bf16.msra.mxu0 %v84
  %107 = vmatprep.subr.bf16.mxu0 0
  %108 = vmatpush1.bf16.msra.mxu0 %v83
  %109 = vmatprep.subr.bf16.mxu0 0
  %110 = vmatpush1.bf16.msra.mxu0 %v82
  %111 = vmatprep.subr.bf16.mxu0 0
  %112 = vmatpush1.bf16.msra.mxu0 %v81
  %113 = vmatprep.subr.bf16.mxu0 0
  %114 = vmatpush2.bf16.msra.mxu0 0
  %115 = vmatprep.subr.bf16.mxu0 0
  %116 = vmatpush2.bf16.msra.mxu0 0
  %117 = vmatprep.subr.bf16.mxu0 0
  %118 = vmatpush2.bf16.msra.mxu0 0
  %119 = vmatprep.subr.bf16.mxu0 0
  %120 = vmatpush2.bf16.msra.mxu0 0
  %121 = vmatprep.subr.bf16.mxu0 0
  %122 = vmatpush2.bf16.msra.mxu0 0
  %123 = vmatprep.subr.bf16.mxu0 0
  %124 = vmatpush2.bf16.msra.mxu0 0
  %125 = vmatprep.subr.bf16.mxu0 0
  %126 = vmatpush2.bf16.msra.mxu0 0
  %127 = vmatprep.subr.bf16.mxu0 0
  %128 = vmatpush2.bf16.msra.mxu0 0
  %129 = vmatprep.mubr.bf16.mxu0 0
  %130 = vmatmul.mubr.bf16.gmra.mxu0 %v47
  %v131 = vpop.f32.mrf.mxu0
  %v132 = vadd.f32 %v41, %v131
  %v133 = vpop.f32.mrf.mxu0
  %v134 = vpop.f32.mrf.mxu0
  %v135 = vadd.f32 %v41, %v134
  %v136 = vpop.f32.mrf.mxu0
  %137 = vdwg.mxu0
  %v138 = vld [vmem:[%s3] sm:$0xff]
  %v139 = vld [vmem:[%s3 + $0x8] sm:$0xff]
  %v140 = vadd.f32 %v132, %v138
  %v141 = vadd.f32 %v135, %v139
  %142 = vst [vmem:[%s4] sm:$0xff] %v140
  %143 = vst [vmem:[%s4 + $0x8] sm:$0xff] %v141
  // Predicated region
  $region18: #{_lambda_.19} parent=0 // pred_check
    _
  $region19: #{_lambda_.19} parent=0 // pred_check_branch
    %145 = sbr.rel (0) target = $region21
  $region20: #{_lambda_.19} parent=0 // pred_region
    _
  $region21: #{_lambda_.19} parent=0 // pred_fallthru
    _
  // Predicated region
  $region22: #{_lambda_.19} parent=0 // pred_check
    _
  $region23: #{_lambda_.19} parent=0 // pred_check_branch
    %147 = sbr.rel (0) target = $region25
  $region24: #{_lambda_.19} parent=0 // pred_region
    _
  $region25: #{_lambda_.19} parent=0 // pred_fallthru
    _

// kernel: _lambda_.25
$region0: #{_lambda_.25}
  #allocation0 [shape = 'u32[]', space=smem, size = 0x4, offset = 0x4, fixed_abs, tag = 'smem constant byte address 0x4 - core index']
  #allocation1 [shape = 'u32[144,128]{1,0:T(1,128)}', space=vmem, size = 0x12000, scoped, tag = 'internal scratch']
  %s0 = inlined_call_operand.vmem [shape: f32[8,32], index: 0, kind: input, shape index: {}]
  %s1 = inlined_call_operand.vmem [shape: bf16[32,128], index: 1, kind: input, shape index: {}]
  %s2 = inlined_call_operand.vmem [shape: f32[1,32], index: 2, kind: input, shape index: {}]
  %s3 = inlined_call_operand.vmem [shape: f32[1,32], index: 3, kind: input, shape index: {}]
  %s4 = inlined_call_operand.vmem [shape: f32[8,128], index: 4, kind: output, shape index: {}]
  %s5 = sld [smem:[#allocation0]]
  $region26: #{_lambda_.25} parent=0
    _
  %s7 = ssub.s32 1, %s5
  %s8 = scalar_select 0, %s7, %s5
  // Predicated region
  $region2: #{_lambda_.25} parent=0 // pred_check
    _
  $region3: #{_lambda_.25} parent=0 // pred_check_branch
    %10 = sbr.rel (0) target = $region5
  $region4: #{_lambda_.25} parent=0 // pred_region
    _
  $region5: #{_lambda_.25} parent=0 // pred_fallthru
    _
  // Predicated region
  $region6: #{_lambda_.25} parent=0 // pred_check
    _
  $region7: #{_lambda_.25} parent=0 // pred_check_branch
    %12 = sbr.rel (0) target = $region9
  $region8: #{_lambda_.25} parent=0 // pred_region
    _
  $region9: #{_lambda_.25} parent=0 // pred_fallthru
    _
  // Predicated region
  $region10: #{_lambda_.25} parent=0 // pred_check
    _
  $region11: #{_lambda_.25} parent=0 // pred_check_branch
    %14 = sbr.rel (0) target = $region13
  $region12: #{_lambda_.25} parent=0 // pred_region
    _
  $region13: #{_lambda_.25} parent=0 // pred_fallthru
    _
  // Predicated region
  $region14: #{_lambda_.25} parent=0 // pred_check
    _
  $region15: #{_lambda_.25} parent=0 // pred_check_branch
    %16 = sbr.rel (0) target = $region17
  $region16: #{_lambda_.25} parent=0 // pred_region
    _
  $region17: #{_lambda_.25} parent=0 // pred_fallthru
    _
  %v18 = vld [vmem:[%s0] sm:$0xff]
  %vm19 = vcmask 261120
  %v20 = vsel %vm19, %v18, 0.0
  %21 = vadd.xlane.f32.xlu0 %v20
  %v22 = vpop.xlane.xlu0 %21
  %v23 = vrcp.pop 32.0
  %v24 = vmul.f32 %v22, %v23
  %v25 = vsub.f32 %v18, %v24
  %v26 = vmul.f32 %v25, %v25
  %v27 = vsel %vm19, %v26, 0.0
  %28 = vadd.xlane.f32.xlu0 %v27
  %v29 = vpop.xlane.xlu0 %28
  %v30 = vmul.f32 %v29, %v23
  %v31 = vadd.f32 %v30, 1e-05
  %v32 = vrsqrt.pop %v31
  %v33 = vmul.f32 %v25, %v32
  %v34 = vld [vmem:[%s2] sm:$0x1]
  %v36 = vlaneseq
  %v37 = vshrl.u32 %v36, 7
  %v38 = vsub.s32 0, %v37
  %v39 = vrot.slane %v34, %v38
  %v41 = vmul.f32 %v33, %v39
  %v42 = vld [vmem:[%s3] sm:$0x1]
  %v44 = vlaneseq
  %v45 = vshrl.u32 %v44, 7
  %v46 = vsub.s32 0, %v45
  %v47 = vrot.slane %v42, %v46
  %v49 = vadd.f32 %v41, %v47
  %v50 = vpack.c.bf16 %v49, %v49
  %v51 = vld [vmem:[%s1] sm:$0xf]
  %v52 = vld [vmem:[%s1 + $0x4] sm:$0xf]
  %v53 = vld [vmem:[%s1 + $0x8] sm:$0xf]
  %v54 = vld [vmem:[%s1 + $0xc] sm:$0xf]
  %v59 = vunpack.c.l.b16 %v51
  %v60 = vunpack.c.l.b16 %v52
  %v61 = vunpack.c.l.b16 %v53
  %v62 = vunpack.c.l.b16 %v54
  %v63 = vpack.c.b16 %v60, %v59
  %v64 = vpack.c.b16 %v62, %v61
  %v68 = vsel %vm19, %v50, 0
  %70 = vmatprep.subr.bf16.mxu0 0
  %71 = vmatpush1.bf16.msra.mxu0 0
  %72 = vmatprep.subr.bf16.mxu0 0
  %73 = vmatpush1.bf16.msra.mxu0 0
  %74 = vmatprep.subr.bf16.mxu0 0
  %75 = vmatpush1.bf16.msra.mxu0 0
  %76 = vmatprep.subr.bf16.mxu0 0
  %77 = vmatpush1.bf16.msra.mxu0 0
  %78 = vmatprep.subr.bf16.mxu0 0
  %79 = vmatpush1.bf16.msra.mxu0 0
  %80 = vmatprep.subr.bf16.mxu0 0
  %81 = vmatpush1.bf16.msra.mxu0 0
  %82 = vmatprep.subr.bf16.mxu0 0
  %83 = vmatpush1.bf16.msra.mxu0 %v64
  %84 = vmatprep.subr.bf16.mxu0 0
  %85 = vmatpush1.bf16.msra.mxu0 %v63
  %86 = vmatprep.subr.bf16.mxu0 0
  %87 = vmatpush2.bf16.msra.mxu0 0
  %88 = vmatprep.subr.bf16.mxu0 0
  %89 = vmatpush2.bf16.msra.mxu0 0
  %90 = vmatprep.subr.bf16.mxu0 0
  %91 = vmatpush2.bf16.msra.mxu0 0
  %92 = vmatprep.subr.bf16.mxu0 0
  %93 = vmatpush2.bf16.msra.mxu0 0
  %94 = vmatprep.subr.bf16.mxu0 0
  %95 = vmatpush2.bf16.msra.mxu0 0
  %96 = vmatprep.subr.bf16.mxu0 0
  %97 = vmatpush2.bf16.msra.mxu0 0
  %98 = vmatprep.subr.bf16.mxu0 0
  %99 = vmatpush2.bf16.msra.mxu0 0
  %100 = vmatprep.subr.bf16.mxu0 0
  %101 = vmatpush2.bf16.msra.mxu0 0
  %102 = vmatprep.mubr.bf16.mxu0 0
  %103 = vmatmul.mubr.bf16.gmra.mxu0 %v68
  %v104 = vpop.f32.mrf.mxu0
  %v105 = vadd.f32 0.0, %v104
  %v106 = vpop.f32.mrf.mxu0
  %v107 = vpop.f32.mrf.mxu0
  %v108 = vpop.f32.mrf.mxu0
  %109 = vdwg.mxu0
  %110 = vst [vmem:[%s4] sm:$0xff] %v105
  // Predicated region
  $region18: #{_lambda_.25} parent=0 // pred_check
    _
  $region19: #{_lambda_.25} parent=0 // pred_check_branch
    %112 = sbr.rel (0) target = $region21
  $region20: #{_lambda_.25} parent=0 // pred_region
    _
  $region21: #{_lambda_.25} parent=0 // pred_fallthru
    _
  // Predicated region
  $region22: #{_lambda_.25} parent=0 // pred_check
    _
  $region23: #{_lambda_.25} parent=0 // pred_check_branch
    %114 = sbr.rel (0) target = $region25
  $region24: #{_lambda_.25} parent=0 // pred_region
    _
  $region25: #{_lambda_.25} parent=0 // pred_fallthru
    _

</llo_original>
